<compile_context>
chip_gen: v7x
topology: tpu7x:2x2x1
jax: 0.10.0
libtpu: 0.0.40
codegen_flags: <defaults>
</compile_context>

<pallas_src>
import jax
import jax.numpy as jnp
from jax.experimental import pallas as pl
from jax.experimental.pallas import tpu as pltpu

HIDDEN = 256           # GraphConfig.hidden_dim default
FFN = HIDDEN * 4       # hidden_dim * 4
EPS = 1e-5             # nn.LayerNorm default eps


def ffn_kernel(x_ref, w1_ref, b1_ref, w2_ref, b2_ref, g_ref, beta_ref, o_ref):
    # x kept in f32 for the residual add / LayerNorm epilogue.
    x = x_ref[...].astype(jnp.float32)                       # (tm, D)

    # linear1: bf16 MXU inputs, f32 accumulation.
    h = jnp.dot(x.astype(jnp.bfloat16), w1_ref[...],
                preferred_element_type=jnp.float32)           # (tm, F) f32

    # bias + ReLU in bf16: halves the VPU passes over the large (tm, F)
    # intermediate on v6e/v7x; it was going to be cast to bf16 for the second
    # matmul anyway, so no additional precision loss.
    h_bf = jnp.maximum(h.astype(jnp.bfloat16) + b1_ref[...], 0.0)

    # dropout: identity in eval mode.
    # TODO(synk): training-mode dropout (stateful PRNG + mask) not implemented.

    # linear2 + bias + residual (f32 accumulate / residual).
    y = jnp.dot(h_bf, w2_ref[...], preferred_element_type=jnp.float32)
    y = y + b2_ref[...] + x                                   # (tm, D) f32

    # LayerNorm over last dim — centered two-pass form (numerically safe;
    # the extra XLU pass is not on the critical slot).
    mean = jnp.mean(y, axis=-1, keepdims=True)
    yc = y - mean
    var = jnp.mean(yc * yc, axis=-1, keepdims=True)
    inv = jax.lax.rsqrt(var + EPS)
    out = yc * inv * g_ref[...] + beta_ref[...]

    o_ref[...] = out.astype(o_ref.dtype)


def _pick_tm(M, tm_max):
    """Row-tile size: big tiles, even split, >=2 blocks for v7x megacore."""
    tm_max = max(8, (tm_max // 8) * 8)
    # >=2 grid blocks whenever there is enough work so both v7x TensorCores
    # (megacore sharding of the single 'parallel' axis) get a share.
    n_blocks = max(pl.cdiv(M, tm_max), 2 if M >= 16 else 1)
    tm = ((pl.cdiv(M, n_blocks) + 7) // 8) * 8   # even split, sublane-aligned
    return min(tm, tm_max)


def feed_forward_network(x, w1, b1, w2, b2, gamma, beta, *, tm=1024):
    """x: (..., D). w1: (D, F), w2: (F, D).

    tm defaults to 1024: x-tile + out-tile (double buffered) + bf16 weights +
    the f32 (tm, F) intermediate stay ~10-14 MiB, comfortably inside the
    32 MiB scoped-VMEM limit requested below on all of v5e/v6e/v7x.
    Pass weights already in bf16 to avoid a per-call HBM convert pass.
    """
    orig_shape = x.shape
    D = x.shape[-1]
    F = w1.shape[1]
    x2 = x.reshape(-1, D)
    M = x2.shape[0]

    tm = _pick_tm(M, tm)
    n_blocks = pl.cdiv(M, tm)
    M_pad = n_blocks * tm
    if M_pad != M:
        # Padded rows compute harmless finite values and are sliced off after.
        x2 = jnp.pad(x2, ((0, M_pad - M), (0, 0)))

    # Weights/bias1 fed to the MXU in bf16. If the caller already stores them
    # in bf16 (recommended), these are no-ops.
    w1_bf = w1 if w1.dtype == jnp.bfloat16 else w1.astype(jnp.bfloat16)
    w2_bf = w2 if w2.dtype == jnp.bfloat16 else w2.astype(jnp.bfloat16)
    b1_2 = b1.reshape(1, F).astype(jnp.bfloat16)
    b2_2 = b2.reshape(1, D).astype(jnp.float32)
    g_2 = gamma.reshape(1, D).astype(jnp.float32)
    beta_2 = beta.reshape(1, D).astype(jnp.float32)

    x_bytes = x2.dtype.itemsize
    cost = pl.CostEstimate(
        flops=4 * M_pad * D * F,                        # two matmuls, 2*M*K*N each
        transcendentals=M_pad,                          # one rsqrt per row
        bytes_accessed=(2 * M_pad * D * x_bytes         # x in + out
                        + 2 * D * F * 2                 # bf16 weights
                        + F * 2 + 3 * D * 4),           # biases / gamma / beta
    )

    out = pl.pallas_call(
        ffn_kernel,
        out_shape=jax.ShapeDtypeStruct((M_pad, D), x.dtype),
        grid_spec=pltpu.PrefetchScalarGridSpec(
            num_scalar_prefetch=0,
            grid=(n_blocks,),
            in_specs=[
                pl.BlockSpec((tm, D), lambda i: (i, 0)),       # x tile (streamed)
                pl.BlockSpec((D, F), lambda i: (0, 0)),        # w1 (resident)
                pl.BlockSpec((1, F), lambda i: (0, 0)),        # b1 (bf16)
                pl.BlockSpec((F, D), lambda i: (0, 0)),        # w2 (resident)
                pl.BlockSpec((1, D), lambda i: (0, 0)),        # b2
                pl.BlockSpec((1, D), lambda i: (0, 0)),        # gamma
                pl.BlockSpec((1, D), lambda i: (0, 0)),        # beta
            ],
            out_specs=pl.BlockSpec((tm, D), lambda i: (i, 0)),
        ),
        compiler_params=pltpu.CompilerParams(
            dimension_semantics=("parallel",),
            vmem_limit_bytes=32 * 1024 * 1024,
        ),
        cost_estimate=cost,
    )(x2, w1_bf, b1_2, w2_bf, b2_2, g_2, beta_2)

    if M_pad != M:
        out = out[:M]
    return out.reshape(orig_shape)


def reference(x, w1, b1, w2, b2, gamma, beta):
    h = jnp.maximum(x @ w1 + b1, 0.0)
    y = h @ w2 + b2 + x
    mean = jnp.mean(y, axis=-1, keepdims=True)
    var = jnp.mean((y - mean) ** 2, axis=-1, keepdims=True)
    return (y - mean) * jax.lax.rsqrt(var + EPS) * gamma + beta


if __name__ == "__main__":
    key = jax.random.PRNGKey(0)
    k_x, k_w1, k_b1, k_w2, k_b2 = jax.random.split(key, 5)

    batch, seq = 2, 8
    x = jax.random.normal(k_x, (batch, seq, HIDDEN), dtype=jnp.float32)

    # deterministic parameter init (uniform like nn.Linear's default range)
    lim1 = 1.0 / (HIDDEN ** 0.5)
    lim2 = 1.0 / (FFN ** 0.5)
    w1 = jax.random.uniform(k_w1, (HIDDEN, FFN), minval=-lim1, maxval=lim1,
                            dtype=jnp.float32)
    b1 = jax.random.uniform(k_b1, (FFN,), minval=-lim1, maxval=lim1,
                            dtype=jnp.float32)
    w2 = jax.random.uniform(k_w2, (FFN, HIDDEN), minval=-lim2, maxval=lim2,
                            dtype=jnp.float32)
    b2 = jax.random.uniform(k_b2, (HIDDEN,), minval=-lim2, maxval=lim2,
                            dtype=jnp.float32)
    gamma = jnp.ones((HIDDEN,), jnp.float32)   # LayerNorm weight init
    beta = jnp.zeros((HIDDEN,), jnp.float32)   # LayerNorm bias init

    # Hoisted once-only bf16 cast of the weights (keeps the per-call hot path
    # free of a ~3 MiB HBM convert pass per layer).
    w1_bf = w1.astype(jnp.bfloat16)
    w2_bf = w2.astype(jnp.bfloat16)

    out = feed_forward_network(x, w1_bf, b1, w2_bf, b2, gamma, beta)
    jax.block_until_ready(out)

    ref = reference(x, w1, b1, w2, b2, gamma, beta)
    assert out.shape == x.shape
    # bf16 MXU inputs / bf16 intermediate with f32 accumulation: looser
    # tolerance than pure f32.
    err = float(jnp.max(jnp.abs(out - ref)))
    assert jnp.allclose(out, ref, atol=2e-2, rtol=2e-2), f"max abs err {err}"

    print("KERNEL_OK")
</pallas_src>

<mosaic_0001>
module attributes {stable_mosaic.version = 11 : i64} {
  func.func @ffn_kernel(%arg0: i32, %arg1: memref<8x256xf32, #tpu.memory_space<vmem>>, %arg2: memref<256x1024xbf16, #tpu.memory_space<vmem>>, %arg3: memref<1x1024xbf16, #tpu.memory_space<vmem>>, %arg4: memref<1024x256xbf16, #tpu.memory_space<vmem>>, %arg5: memref<1x256xf32, #tpu.memory_space<vmem>>, %arg6: memref<1x256xf32, #tpu.memory_space<vmem>>, %arg7: memref<1x256xf32, #tpu.memory_space<vmem>>, %arg8: memref<8x256xf32, #tpu.memory_space<vmem>>) attributes {dimension_semantics = [#tpu.dimension_semantics<parallel>], iteration_bounds = array<i64: 2>, scalar_prefetch = 0 : i64, scratch_operands = 0 : i64, tpu.core_type = #tpu.core_type<tc>, window_params = [{transform_indices = @transform_0, window_bounds = array<i64: 8, 256>}, {pipeline_mode = #tpu.pipeline_mode<synchronous>, transform_indices = @transform_1, window_bounds = array<i64: 256, 1024>}, {pipeline_mode = #tpu.pipeline_mode<synchronous>, transform_indices = @transform_2, window_bounds = array<i64: 1, 1024>}, {pipeline_mode = #tpu.pipeline_mode<synchronous>, transform_indices = @transform_3, window_bounds = array<i64: 1024, 256>}, {pipeline_mode = #tpu.pipeline_mode<synchronous>, transform_indices = @transform_4, window_bounds = array<i64: 1, 256>}, {pipeline_mode = #tpu.pipeline_mode<synchronous>, transform_indices = @transform_5, window_bounds = array<i64: 1, 256>}, {pipeline_mode = #tpu.pipeline_mode<synchronous>, transform_indices = @transform_6, window_bounds = array<i64: 1, 256>}, {transform_indices = @transform_7, window_bounds = array<i64: 8, 256>}]} {
    %c0 = arith.constant 0 : index
    %c0_0 = arith.constant 0 : index
    %0 = vector.load %arg1[%c0, %c0_0] : memref<8x256xf32, #tpu.memory_space<vmem>>, vector<8x256xf32>
    %1 = arith.truncf %0 : vector<8x256xf32> to vector<8x256xbf16>
    %c0_1 = arith.constant 0 : index
    %c0_2 = arith.constant 0 : index
    %2 = vector.load %arg2[%c0_1, %c0_2] : memref<256x1024xbf16, #tpu.memory_space<vmem>>, vector<256x1024xbf16>
    %cst = arith.constant dense<0.000000e+00> : vector<8x1024xf32>
    %3 = tpu.matmul %1, %2, %cst {dimension_numbers = #tpu.dot_dimension_numbers<[1], [0], [0], [1], [0, 0, 1, 1], [], []>} : vector<8x256xbf16>, vector<256x1024xbf16>, vector<8x1024xf32> -> vector<8x1024xf32>
    %4 = arith.truncf %3 : vector<8x1024xf32> to vector<8x1024xbf16>
    %c0_3 = arith.constant 0 : index
    %c0_4 = arith.constant 0 : index
    %5 = vector.load %arg3[%c0_3, %c0_4] : memref<1x1024xbf16, #tpu.memory_space<vmem>>, vector<1x1024xbf16>
    %6 = vector.broadcast %5 : vector<1x1024xbf16> to vector<8x1024xbf16>
    %7 = arith.addf %4, %6 : vector<8x1024xbf16>
    %cst_5 = arith.constant 0.000000e+00 : bf16
    %8 = vector.broadcast %cst_5 : bf16 to vector<8x1024xbf16>
    %9 = arith.maximumf %7, %8 : vector<8x1024xbf16>
    %c0_6 = arith.constant 0 : index
    %c0_7 = arith.constant 0 : index
    %10 = vector.load %arg4[%c0_6, %c0_7] : memref<1024x256xbf16, #tpu.memory_space<vmem>>, vector<1024x256xbf16>
    %cst_8 = arith.constant dense<0.000000e+00> : vector<8x256xf32>
    %11 = tpu.matmul %9, %10, %cst_8 {dimension_numbers = #tpu.dot_dimension_numbers<[1], [0], [0], [1], [0, 0, 1, 1], [], []>} : vector<8x1024xbf16>, vector<1024x256xbf16>, vector<8x256xf32> -> vector<8x256xf32>
    %c0_9 = arith.constant 0 : index
    %c0_10 = arith.constant 0 : index
    %12 = vector.load %arg5[%c0_9, %c0_10] : memref<1x256xf32, #tpu.memory_space<vmem>>, vector<1x256xf32>
    %13 = vector.broadcast %12 : vector<1x256xf32> to vector<8x256xf32>
    %14 = arith.addf %11, %13 : vector<8x256xf32>
    %15 = arith.addf %14, %0 : vector<8x256xf32>
    %cst_11 = arith.constant dense<0.000000e+00> : vector<8xf32>
    %16 = vector.multi_reduction <add>, %15, %cst_11 [1] : vector<8x256xf32> to vector<8xf32>
    %17 = vector.shape_cast %16 : vector<8xf32> to vector<8x1xf32>
    %cst_12 = arith.constant 2.560000e+02 : f32
    %18 = vector.broadcast %cst_12 : f32 to vector<8x1xf32>
    %19 = arith.divf %17, %18 : vector<8x1xf32>
    %20 = vector.broadcast %19 : vector<8x1xf32> to vector<8x256xf32>
    %21 = arith.subf %15, %20 : vector<8x256xf32>
    %22 = arith.mulf %21, %21 : vector<8x256xf32>
    %cst_13 = arith.constant dense<0.000000e+00> : vector<8xf32>
    %23 = vector.multi_reduction <add>, %22, %cst_13 [1] : vector<8x256xf32> to vector<8xf32>
    %24 = vector.shape_cast %23 : vector<8xf32> to vector<8x1xf32>
    %cst_14 = arith.constant 2.560000e+02 : f32
    %25 = vector.broadcast %cst_14 : f32 to vector<8x1xf32>
    %26 = arith.divf %24, %25 : vector<8x1xf32>
    %cst_15 = arith.constant 9.99999974E-6 : f32
    %27 = vector.broadcast %cst_15 : f32 to vector<8x1xf32>
    %28 = arith.addf %26, %27 : vector<8x1xf32>
    %29 = math.rsqrt %28 : vector<8x1xf32>
    %30 = vector.broadcast %29 : vector<8x1xf32> to vector<8x256xf32>
    %31 = arith.mulf %21, %30 : vector<8x256xf32>
    %c0_16 = arith.constant 0 : index
    %c0_17 = arith.constant 0 : index
    %32 = vector.load %arg6[%c0_16, %c0_17] : memref<1x256xf32, #tpu.memory_space<vmem>>, vector<1x256xf32>
    %33 = vector.broadcast %32 : vector<1x256xf32> to vector<8x256xf32>
    %34 = arith.mulf %31, %33 : vector<8x256xf32>
    %c0_18 = arith.constant 0 : index
    %c0_19 = arith.constant 0 : index
    %35 = vector.load %arg7[%c0_18, %c0_19] : memref<1x256xf32, #tpu.memory_space<vmem>>, vector<1x256xf32>
    %36 = vector.broadcast %35 : vector<1x256xf32> to vector<8x256xf32>
    %37 = arith.addf %34, %36 : vector<8x256xf32>
    %c0_20 = arith.constant 0 : index
    %c0_21 = arith.constant 0 : index
    %38 = vector.load %arg8[%c0_20, %c0_21] : memref<8x256xf32, #tpu.memory_space<vmem>>, vector<8x256xf32>
    tpu.vector_store %arg8[%c0_20, %c0_21], %37 {strides = array<i32>} : memref<8x256xf32, #tpu.memory_space<vmem>>, vector<8x256xf32>,
    return
  }
  func.func @transform_0(%arg0: i32) -> (i32, i32) {
    %c0_i32 = arith.constant 0 : i32
    %c0_i32_0 = arith.constant 0 : i32
    return %arg0, %c0_i32 : i32, i32
  }
  func.func @transform_1(%arg0: i32) -> (i32, i32) {
    %c0_i32 = arith.constant 0 : i32
    %c0_i32_0 = arith.constant 0 : i32
    %c0_i32_1 = arith.constant 0 : i32
    return %c0_i32, %c0_i32_0 : i32, i32
  }
  func.func @transform_2(%arg0: i32) -> (i32, i32) {
    %c0_i32 = arith.constant 0 : i32
    %c0_i32_0 = arith.constant 0 : i32
    %c0_i32_1 = arith.constant 0 : i32
    return %c0_i32, %c0_i32_0 : i32, i32
  }
  func.func @transform_3(%arg0: i32) -> (i32, i32) {
    %c0_i32 = arith.constant 0 : i32
    %c0_i32_0 = arith.constant 0 : i32
    %c0_i32_1 = arith.constant 0 : i32
    return %c0_i32, %c0_i32_0 : i32, i32
  }
  func.func @transform_4(%arg0: i32) -> (i32, i32) {
    %c0_i32 = arith.constant 0 : i32
    %c0_i32_0 = arith.constant 0 : i32
    %c0_i32_1 = arith.constant 0 : i32
    return %c0_i32, %c0_i32_0 : i32, i32
  }
  func.func @transform_5(%arg0: i32) -> (i32, i32) {
    %c0_i32 = arith.constant 0 : i32
    %c0_i32_0 = arith.constant 0 : i32
    %c0_i32_1 = arith.constant 0 : i32
    return %c0_i32, %c0_i32_0 : i32, i32
  }
  func.func @transform_6(%arg0: i32) -> (i32, i32) {
    %c0_i32 = arith.constant 0 : i32
    %c0_i32_0 = arith.constant 0 : i32
    %c0_i32_1 = arith.constant 0 : i32
    return %c0_i32, %c0_i32_0 : i32, i32
  }
  func.func @transform_7(%arg0: i32) -> (i32, i32) {
    %c0_i32 = arith.constant 0 : i32
    %c0_i32_0 = arith.constant 0 : i32
    return %arg0, %c0_i32 : i32, i32
  }
}

</mosaic_0001>

<llo_original>
// kernel: tpu_custom_call.1
$region0: #{tpu_custom_call.1}
  #allocation0 [shape = 'u32[]', space=smem, size = 0x4, offset = 0x4, fixed_abs, tag = 'smem constant byte address 0x4 - core index']
  #allocation1 [shape = 'u32[144,128]{1,0:T(1,128)}', space=vmem, size = 0x12000, scoped, tag = 'internal scratch']
  %s0 = inlined_call_operand.hbm [shape: f32[16,256], index: 0, kind: input, shape index: {}]
  %s1 = inlined_call_operand.hbm [shape: bf16[256,1024], index: 1, kind: input, shape index: {}]
  %s2 = inlined_call_operand.hbm [shape: bf16[1,1024], index: 2, kind: input, shape index: {}]
  %s3 = inlined_call_operand.hbm [shape: bf16[1024,256], index: 3, kind: input, shape index: {}]
  %s4 = inlined_call_operand.vmem [shape: f32[1,256], index: 4, kind: input, shape index: {}]
  %s5 = inlined_call_operand.vmem [shape: f32[1,256], index: 5, kind: input, shape index: {}]
  %s6 = inlined_call_operand.vmem [shape: f32[1,256], index: 6, kind: input, shape index: {}]
  %s7 = inlined_call_operand.hbm [shape: f32[16,256], index: 7, kind: output, shape index: {}]
  %s8 = sld [smem:[#allocation0]]
  $region77: #{tpu_custom_call.1} parent=0
    _
  %s10 = ssub.s32 1, %s8
  %s11 = scalar_select 0, %s10, %s8
  $region1: #{tpu_custom_call.1} parent=0
    #allocation2 [shape = 'u8[16384]{0}', space=vmem, size = 0x4000, scoped, tag = 'input window, operand 0']
    #allocation3 [shape = 's32[2]{0}', space=sflag, size = 0x8, scoped, tag = 'scoped memory for tpu_custom_call.1']
    #allocation4 [shape = 's32[2]{0}', space=sflag, size = 0x8, scoped, tag = 'scoped memory for tpu_custom_call.1']
    #allocation5 [shape = 'u8[524288]{0}', space=vmem, size = 0x80000, scoped, tag = 'input window, operand 1, single buffered']
    #allocation6 [shape = 's32[1]{0}', space=sflag, size = 0x4, scoped, tag = 'scoped memory for tpu_custom_call.1']
    #allocation7 [shape = 'u8[4096]{0}', space=vmem, size = 0x1000, scoped, tag = 'input window, operand 2, single buffered']
    #allocation8 [shape = 'u8[524288]{0}', space=vmem, size = 0x80000, scoped, tag = 'input window, operand 3, single buffered']
    #allocation9 [shape = 's32[1]{0}', space=sflag, size = 0x4, scoped, tag = 'scoped memory for tpu_custom_call.1']
    #allocation10 [shape = 'u8[16384]{0}', space=vmem, size = 0x4000, scoped, tag = 'output window, operand 0']
    %12 = vsyncpa [#allocation3], 0
    %s13 = scalar_lea.sflag [#allocation3], 1
    %14 = vsyncpa %s13, 0
    %15 = vsyncpa [#allocation6], 0
    %16 = vsyncpa [#allocation9], 0
    %17 = vsyncpa [#allocation4], 0
    %s18 = scalar_lea.sflag [#allocation4], 1
    %19 = vsyncpa %s18, 0
    loop: start=0, step=1, limit=4
    $region2: #{tpu_custom_call.1} parent=1 // loop_pre_header
      _
    $region3: #{tpu_custom_call.1} parent=1 // loop_header
      %s21 = sphi 0, %s25
      %p22 = scmp.ge.s32.totalorder %s21, 4
      %s31 = sphi 0, %s33
      %s34 = sphi 0, %s31
      %s35 = sphi 0, %s34
      %s51 = sphi 0, %s35
      %s55 = sphi 0, %s55
      %s57 = sphi 0, %s55
      %s58 = sphi 0, %s57
      %s72 = sphi 0, %s58
      %s76 = sphi 0, %s76
      %s78 = sphi 0, %s76
      %s79 = sphi 0, %s78
      %s93 = sphi 0, %s79
      %s97 = sphi 0, %s97
      %s99 = sphi 0, %s97
      %s100 = sphi 0, %s99
      %s114 = sphi 0, %s100
      %s118 = sphi 0, %s118
      %s120 = sphi 0, %s118
      %s121 = sphi 0, %s120
      %s135 = sphi 0, %s121
      %s139 = sphi 0, %s139
      %s141 = sphi 0, %s139
      %s142 = sphi 0, %s141
      %s156 = sphi 0, %s142
      %s160 = sphi 0, %s160
      %s162 = sphi 0, %s160
      %s163 = sphi 0, %s162
      %s177 = sphi 0, %s163
      %s183 = sphi 0, %s185
      %s186 = sphi 0, %s183
      %s187 = sphi 0, %s186
      %s203 = sphi 0, %s187
    $region4: #{tpu_custom_call.1} parent=1 // loop_header_branch
      %24 = sbr.rel (%p22) target = $region8
    $region5: #{tpu_custom_call.1} parent=1 // loop_body
      %s26 = ssub.s32 %s21, 1
      %s27 = ssub.s32 %s21, 2
      %s28 = sadd.s32 %s21, 1
      %s29 = ssub.s32 %s21, %s28
      %p30 = scmp.eq.s32.totalorder %s29, 0
      %s32 = sadd.s32 %s31, 1
      %s33 = scalar_select %p30, %s31, %s32
      %p36 = pneg %p30
      %p37 = scmp.eq.s32.totalorder %s21, 1
      %p38 = por %p36, %p37
      %p39 = scmp.ne.s32.totalorder %s31, %s34
      %p40 = scmp.eq.s32.totalorder %s21, 0
      %p41 = por %p39, %p40
      %p42 = scmp.ne.s32.totalorder %s31, %s34
      %p43 = scmp.eq.s32.totalorder %s26, 1
      %p44 = por %p42, %p43
      %p45 = scmp.ne.s32.totalorder %s34, %s35
      %p46 = scmp.eq.s32.totalorder %s26, 0
      %p47 = por %p45, %p46
      %p48 = scmp.ne.s32.totalorder %s34, %s35
      %p49 = scmp.eq.s32.totalorder %s27, 1
      %p50 = por %p48, %p49
      %p52 = scmp.ne.s32.totalorder %s35, %s51
      %p53 = scmp.eq.s32.totalorder %s27, 0
      %p54 = por %p52, %p53
      %s56 = sadd.s32 %s55, 1
      %p59 = scmp.eq.s32.totalorder %s21, 1
      %p60 = scmp.ne.s32.totalorder %s55, %s57
      %p61 = scmp.eq.s32.totalorder %s21, 0
      %p62 = por %p60, %p61
      %p63 = scmp.ne.s32.totalorder %s55, %s57
      %p64 = scmp.eq.s32.totalorder %s26, 1
      %p65 = por %p63, %p64
      %p66 = scmp.ne.s32.totalorder %s57, %s58
      %p67 = scmp.eq.s32.totalorder %s26, 0
      %p68 = por %p66, %p67
      %p69 = scmp.ne.s32.totalorder %s57, %s58
      %p70 = scmp.eq.s32.totalorder %s27, 1
      %p71 = por %p69, %p70
      %p73 = scmp.ne.s32.totalorder %s58, %s72
      %p74 = scmp.eq.s32.totalorder %s27, 0
      %p75 = por %p73, %p74
      %s77 = sadd.s32 %s76, 1
      %p80 = scmp.eq.s32.totalorder %s21, 1
      %p81 = scmp.ne.s32.totalorder %s76, %s78
      %p82 = scmp.eq.s32.totalorder %s21, 0
      %p83 = por %p81, %p82
      %p84 = scmp.ne.s32.totalorder %s76, %s78
      %p85 = scmp.eq.s32.totalorder %s26, 1
      %p86 = por %p84, %p85
      %p87 = scmp.ne.s32.totalorder %s78, %s79
      %p88 = scmp.eq.s32.totalorder %s26, 0
      %p89 = por %p87, %p88
      %p90 = scmp.ne.s32.totalorder %s78, %s79
      %p91 = scmp.eq.s32.totalorder %s27, 1
      %p92 = por %p90, %p91
      %p94 = scmp.ne.s32.totalorder %s79, %s93
      %p95 = scmp.eq.s32.totalorder %s27, 0
      %p96 = por %p94, %p95
      %s98 = sadd.s32 %s97, 1
      %p101 = scmp.eq.s32.totalorder %s21, 1
      %p102 = scmp.ne.s32.totalorder %s97, %s99
      %p103 = scmp.eq.s32.totalorder %s21, 0
      %p104 = por %p102, %p103
      %p105 = scmp.ne.s32.totalorder %s97, %s99
      %p106 = scmp.eq.s32.totalorder %s26, 1
      %p107 = por %p105, %p106
      %p108 = scmp.ne.s32.totalorder %s99, %s100
      %p109 = scmp.eq.s32.totalorder %s26, 0
      %p110 = por %p108, %p109
      %p111 = scmp.ne.s32.totalorder %s99, %s100
      %p112 = scmp.eq.s32.totalorder %s27, 1
      %p113 = por %p111, %p112
      %p115 = scmp.ne.s32.totalorder %s100, %s114
      %p116 = scmp.eq.s32.totalorder %s27, 0
      %p117 = por %p115, %p116
      %s119 = sadd.s32 %s118, 1
      %p122 = scmp.eq.s32.totalorder %s21, 1
      %p123 = scmp.ne.s32.totalorder %s118, %s120
      %p124 = scmp.eq.s32.totalorder %s21, 0
      %p125 = por %p123, %p124
      %p126 = scmp.ne.s32.totalorder %s118, %s120
      %p127 = scmp.eq.s32.totalorder %s26, 1
      %p128 = por %p126, %p127
      %p129 = scmp.ne.s32.totalorder %s120, %s121
      %p130 = scmp.eq.s32.totalorder %s26, 0
      %p131 = por %p129, %p130
      %p132 = scmp.ne.s32.totalorder %s120, %s121
      %p133 = scmp.eq.s32.totalorder %s27, 1
      %p134 = por %p132, %p133
      %p136 = scmp.ne.s32.totalorder %s121, %s135
      %p137 = scmp.eq.s32.totalorder %s27, 0
      %p138 = por %p136, %p137
      %s140 = sadd.s32 %s139, 1
      %p143 = scmp.eq.s32.totalorder %s21, 1
      %p144 = scmp.ne.s32.totalorder %s139, %s141
      %p145 = scmp.eq.s32.totalorder %s21, 0
      %p146 = por %p144, %p145
      %p147 = scmp.ne.s32.totalorder %s139, %s141
      %p148 = scmp.eq.s32.totalorder %s26, 1
      %p149 = por %p147, %p148
      %p150 = scmp.ne.s32.totalorder %s141, %s142
      %p151 = scmp.eq.s32.totalorder %s26, 0
      %p152 = por %p150, %p151
      %p153 = scmp.ne.s32.totalorder %s141, %s142
      %p154 = scmp.eq.s32.totalorder %s27, 1
      %p155 = por %p153, %p154
      %p157 = scmp.ne.s32.totalorder %s142, %s156
      %p158 = scmp.eq.s32.totalorder %s27, 0
      %p159 = por %p157, %p158
      %s161 = sadd.s32 %s160, 1
      %p164 = scmp.eq.s32.totalorder %s21, 1
      %p165 = scmp.ne.s32.totalorder %s160, %s162
      %p166 = scmp.eq.s32.totalorder %s21, 0
      %p167 = por %p165, %p166
      %p168 = scmp.ne.s32.totalorder %s160, %s162
      %p169 = scmp.eq.s32.totalorder %s26, 1
      %p170 = por %p168, %p169
      %p171 = scmp.ne.s32.totalorder %s162, %s163
      %p172 = scmp.eq.s32.totalorder %s26, 0
      %p173 = por %p171, %p172
      %p174 = scmp.ne.s32.totalorder %s162, %s163
      %p175 = scmp.eq.s32.totalorder %s27, 1
      %p176 = por %p174, %p175
      %p178 = scmp.ne.s32.totalorder %s163, %s177
      %p179 = scmp.eq.s32.totalorder %s27, 0
      %p180 = por %p178, %p179
      %s181 = ssub.s32 %s21, %s28
      %p182 = scmp.eq.s32.totalorder %s181, 0
      %s184 = sadd.s32 %s183, 1
      %s185 = scalar_select %p182, %s183, %s184
      %p188 = pneg %p182
      %p189 = scmp.eq.s32.totalorder %s21, 1
      %p190 = por %p188, %p189
      %p191 = scmp.ne.s32.totalorder %s183, %s186
      %p192 = scmp.eq.s32.totalorder %s21, 0
      %p193 = por %p191, %p192
      %p194 = scmp.ne.s32.totalorder %s183, %s186
      %p195 = scmp.eq.s32.totalorder %s26, 1
      %p196 = por %p194, %p195
      %p197 = scmp.ne.s32.totalorder %s186, %s187
      %p198 = scmp.eq.s32.totalorder %s26, 0
      %p199 = por %p197, %p198
      %p200 = scmp.ne.s32.totalorder %s186, %s187
      %p201 = scmp.eq.s32.totalorder %s27, 1
      %p202 = por %p200, %p201
      %p204 = scmp.ne.s32.totalorder %s187, %s203
      %p205 = scmp.eq.s32.totalorder %s27, 0
      %p206 = por %p204, %p205
      %p207 = scmp.le.s32.totalorder 1, %s21
      %p208 = scmp.lt.s32.totalorder %s21, 3
      %p209 = pnand %p207, %p208
      %p210 = pneg %p209
      // Predicated region
      $region9: #{tpu_custom_call.1} parent=5 // pred_check
        _
      $region10: #{tpu_custom_call.1} parent=5 // pred_check_branch
        %212 = sbr.rel (%p209) target = $region12
      $region11: #{tpu_custom_call.1} parent=5 // pred_region
        %s213 = ssub.s32 %s21, 1
        // Predicated region
        $region13: #{tpu_custom_call.1} parent=11 // pred_check
          %p214 = pneg %p68
        $region14: #{tpu_custom_call.1} parent=11 // pred_check_branch
          %216 = sbr.rel (%p214) target = $region16
        $region15: #{tpu_custom_call.1} parent=11 // pred_region
          %s218 = ssub.s32 16384, 16384
          %219 = vsyncadd [#allocation6], %s218
          %s220 = sshll.u32 [#allocation5], 4
          %s221 = int_to_ptr.vmem [resolvable:$true] %s220
          %226 = dma.hbm_to_vmem [thread:$0]  %s1, 16384, %s221, [#allocation6], 512, 512, 32
        $region16: #{tpu_custom_call.1} parent=11 // pred_fallthru
          _
        // Predicated region
        $region17: #{tpu_custom_call.1} parent=11 // pred_check
          %p227 = pneg %p89
        $region18: #{tpu_custom_call.1} parent=11 // pred_check_branch
          %229 = sbr.rel (%p227) target = $region20
        $region19: #{tpu_custom_call.1} parent=11 // pred_region
          %s231 = ssub.s32 128, 128
          %232 = vsyncadd [#allocation6], %s231
          %s234 = sshll.u32 [#allocation7], 4
          %s235 = int_to_ptr.vmem [resolvable:$true] %s234
          %237 = dma.hbm_to_vmem [thread:$0]  %s2, 128, %s235, [#allocation6]
        $region20: #{tpu_custom_call.1} parent=11 // pred_fallthru
          _
        // Predicated region
        $region21: #{tpu_custom_call.1} parent=11 // pred_check
          %p238 = pneg %p110
        $region22: #{tpu_custom_call.1} parent=11 // pred_check_branch
          %240 = sbr.rel (%p238) target = $region24
        $region23: #{tpu_custom_call.1} parent=11 // pred_region
          %s242 = ssub.s32 16384, 16384
          %243 = vsyncadd [#allocation9], %s242
          %s244 = sshll.u32 [#allocation8], 4
          %s245 = int_to_ptr.vmem [resolvable:$true] %s244
          %250 = dma.hbm_to_vmem [thread:$0]  %s3, 16384, %s245, [#allocation9], 128, 128, 8
        $region24: #{tpu_custom_call.1} parent=11 // pred_fallthru
          _
        // Predicated region
        $region25: #{tpu_custom_call.1} parent=11 // pred_check
          %p251 = pneg %p131
        $region26: #{tpu_custom_call.1} parent=11 // pred_check_branch
          %253 = sbr.rel (%p251) target = $region28
        $region27: #{tpu_custom_call.1} parent=11 // pred_region
          _
        $region28: #{tpu_custom_call.1} parent=11 // pred_fallthru
          _
        // Predicated region
        $region29: #{tpu_custom_call.1} parent=11 // pred_check
          %p254 = pneg %p152
        $region30: #{tpu_custom_call.1} parent=11 // pred_check_branch
          %256 = sbr.rel (%p254) target = $region32
        $region31: #{tpu_custom_call.1} parent=11 // pred_region
          _
        $region32: #{tpu_custom_call.1} parent=11 // pred_fallthru
          _
        // Predicated region
        $region33: #{tpu_custom_call.1} parent=11 // pred_check
          %p257 = pneg %p173
        $region34: #{tpu_custom_call.1} parent=11 // pred_check_branch
          %259 = sbr.rel (%p257) target = $region36
        $region35: #{tpu_custom_call.1} parent=11 // pred_region
          _
        $region36: #{tpu_custom_call.1} parent=11 // pred_fallthru
          _
      $region12: #{tpu_custom_call.1} parent=5 // pred_fallthru
        _
      %p260 = scmp.lt.s32.totalorder %s21, 2
      // Predicated region
      $region37: #{tpu_custom_call.1} parent=5 // pred_check
        %p261 = pneg %p260
      $region38: #{tpu_custom_call.1} parent=5 // pred_check_branch
        %263 = sbr.rel (%p261) target = $region40
      $region39: #{tpu_custom_call.1} parent=5 // pred_region
        // Predicated region
        $region41: #{tpu_custom_call.1} parent=39 // pred_check
          %p264 = pneg %p41
        $region42: #{tpu_custom_call.1} parent=39 // pred_check_branch
          %266 = sbr.rel (%p264) target = $region44
        $region43: #{tpu_custom_call.1} parent=39 // pred_region
          %s267 = sand.u32 %s31, 1
          %s268 = scalar_lea.sflag [#allocation3], %s267
          %s269 = sand.u32 %s31, 1
          %s270 = smul.addr %s269, 16
          %s271 = scalar_lea.vmem [#allocation2], %s270
          %s273 = ssub.s32 256, 256
          %274 = vsyncadd %s268, %s273
          %s275 = smul.addr %s21, 2
          %s276 = smul.addr %s275, 128
          %s277 = scalar_lea.hbm %s0, %s276
          %s279 = sshll.u32 %s271, 4
          %s280 = int_to_ptr.vmem [resolvable:$true] %s279
          %282 = dma.hbm_to_vmem [thread:$0]  %s277, 256, %s280, %s268
        $region44: #{tpu_custom_call.1} parent=39 // pred_fallthru
          _
      $region40: #{tpu_custom_call.1} parent=5 // pred_fallthru
        _
      %p283 = scmp.le.s32.totalorder 1, %s21
      %p284 = scmp.lt.s32.totalorder %s21, 3
      %p285 = pnand %p283, %p284
      %p286 = pneg %p285
      // Predicated region
      $region45: #{tpu_custom_call.1} parent=5 // pred_check
        _
      $region46: #{tpu_custom_call.1} parent=5 // pred_check_branch
        %288 = sbr.rel (%p285) target = $region48
      $region47: #{tpu_custom_call.1} parent=5 // pred_region
        %s289 = ssub.s32 %s21, 1
        %s290 = sand.u32 %s34, 1
        %s291 = scalar_lea.sflag [#allocation3], %s290
        %s292 = sand.u32 %s34, 1
        %s293 = smul.addr %s292, 16
        %s294 = scalar_lea.vmem [#allocation2], %s293
        // Predicated region
        $region49: #{tpu_custom_call.1} parent=47 // pred_check
          %p295 = pneg %p47
        $region50: #{tpu_custom_call.1} parent=47 // pred_check_branch
          %297 = sbr.rel (%p295) target = $region52
        $region51: #{tpu_custom_call.1} parent=47 // pred_region
          %298 = dma.done %s291, 256
        $region52: #{tpu_custom_call.1} parent=47 // pred_fallthru
          _
        // Predicated region
        $region53: #{tpu_custom_call.1} parent=47 // pred_check
          %p299 = pneg %p68
        $region54: #{tpu_custom_call.1} parent=47 // pred_check_branch
          %301 = sbr.rel (%p299) target = $region56
        $region55: #{tpu_custom_call.1} parent=47 // pred_region
          %302 = dma.done [#allocation6], 16384
        $region56: #{tpu_custom_call.1} parent=47 // pred_fallthru
          _
        // Predicated region
        $region57: #{tpu_custom_call.1} parent=47 // pred_check
          %p303 = pneg %p89
        $region58: #{tpu_custom_call.1} parent=47 // pred_check_branch
          %305 = sbr.rel (%p303) target = $region60
        $region59: #{tpu_custom_call.1} parent=47 // pred_region
          %306 = dma.done [#allocation6], 128
        $region60: #{tpu_custom_call.1} parent=47 // pred_fallthru
          _
        // Predicated region
        $region61: #{tpu_custom_call.1} parent=47 // pred_check
          %p307 = pneg %p110
        $region62: #{tpu_custom_call.1} parent=47 // pred_check_branch
          %309 = sbr.rel (%p307) target = $region64
        $region63: #{tpu_custom_call.1} parent=47 // pred_region
          %310 = dma.done [#allocation9], 16384
        $region64: #{tpu_custom_call.1} parent=47 // pred_fallthru
          _
        %s311 = sand.u32 %s34, 1
        %s312 = scalar_lea.sflag [#allocation3], %s311
        %s313 = sand.u32 %s34, 1
        %s314 = smul.addr %s313, 16
        %s315 = scalar_lea.vmem [#allocation2], %s314
        %p316 = pneg %p47
        %p317 = pneg %p44
        %p318 = pneg %p68
        %p319 = pneg %p65
        %p320 = pneg %p89
        %p321 = pneg %p86
        %p322 = pneg %p110
        %p323 = pneg %p107
        %p324 = pneg %p131
        %p325 = pneg %p128
        %p326 = pneg %p152
        %p327 = pneg %p149
        %p328 = pneg %p173
        %p329 = pneg %p170
        %p330 = pneg %p199
        %p331 = pneg %p196
        %s332 = sand.u32 %s186, 1
        %s333 = scalar_lea.sflag [#allocation4], %s332
        %s334 = sand.u32 %s186, 1
        %s335 = smul.addr %s334, 16
        %s336 = scalar_lea.vmem [#allocation10], %s335
        %v338 = vld [vmem:[%s294] sm:$0xff]
        %v339 = vld [vmem:[%s294 + $0x8] sm:$0xff]
        %v340 = vpack.c.bf16 %v338, %v338
        %v341 = vpack.c.bf16 %v339, %v339
        %v342 = vld [vmem:[#allocation5] sm:$0xff]
        %v343 = vld [vmem:[#allocation5 + $0x8] sm:$0xff]
        %v344 = vld [vmem:[#allocation5 + $0x10] sm:$0xff]
        %v345 = vld [vmem:[#allocation5 + $0x18] sm:$0xff]
        %v346 = vld [vmem:[#allocation5 + $0x20] sm:$0xff]
        %v347 = vld [vmem:[#allocation5 + $0x28] sm:$0xff]
        %v348 = vld [vmem:[#allocation5 + $0x30] sm:$0xff]
        %v349 = vld [vmem:[#allocation5 + $0x38] sm:$0xff]
        %v350 = vld [vmem:[#allocation5 + $0x40] sm:$0xff]
        %v351 = vld [vmem:[#allocation5 + $0x48] sm:$0xff]
        %v352 = vld [vmem:[#allocation5 + $0x50] sm:$0xff]
        %v353 = vld [vmem:[#allocation5 + $0x58] sm:$0xff]
        %v354 = vld [vmem:[#allocation5 + $0x60] sm:$0xff]
        %v355 = vld [vmem:[#allocation5 + $0x68] sm:$0xff]
        %v356 = vld [vmem:[#allocation5 + $0x70] sm:$0xff]
        %v357 = vld [vmem:[#allocation5 + $0x78] sm:$0xff]
        %v358 = vld [vmem:[#allocation5 + $0x80] sm:$0xff]
        %v359 = vld [vmem:[#allocation5 + $0x88] sm:$0xff]
        %v360 = vld [vmem:[#allocation5 + $0x90] sm:$0xff]
        %v361 = vld [vmem:[#allocation5 + $0x98] sm:$0xff]
        %v362 = vld [vmem:[#allocation5 + $0xa0] sm:$0xff]
        %v363 = vld [vmem:[#allocation5 + $0xa8] sm:$0xff]
        %v364 = vld [vmem:[#allocation5 + $0xb0] sm:$0xff]
        %v365 = vld [vmem:[#allocation5 + $0xb8] sm:$0xff]
        %v366 = vld [vmem:[#allocation5 + $0xc0] sm:$0xff]
        %v367 = vld [vmem:[#allocation5 + $0xc8] sm:$0xff]
        %v368 = vld [vmem:[#allocation5 + $0xd0] sm:$0xff]
        %v369 = vld [vmem:[#allocation5 + $0xd8] sm:$0xff]
        %v370 = vld [vmem:[#allocation5 + $0xe0] sm:$0xff]
        %v371 = vld [vmem:[#allocation5 + $0xe8] sm:$0xff]
        %v372 = vld [vmem:[#allocation5 + $0xf0] sm:$0xff]
        %v373 = vld [vmem:[#allocation5 + $0xf8] sm:$0xff]
        %v374 = vld [vmem:[#allocation5 + $0x100] sm:$0xff]
        %v375 = vld [vmem:[#allocation5 + $0x108] sm:$0xff]
        %v376 = vld [vmem:[#allocation5 + $0x110] sm:$0xff]
        %v377 = vld [vmem:[#allocation5 + $0x118] sm:$0xff]
        %v378 = vld [vmem:[#allocation5 + $0x120] sm:$0xff]
        %v379 = vld [vmem:[#allocation5 + $0x128] sm:$0xff]
        %v380 = vld [vmem:[#allocation5 + $0x130] sm:$0xff]
        %v381 = vld [vmem:[#allocation5 + $0x138] sm:$0xff]
        %v382 = vld [vmem:[#allocation5 + $0x140] sm:$0xff]
        %v383 = vld [vmem:[#allocation5 + $0x148] sm:$0xff]
        %v384 = vld [vmem:[#allocation5 + $0x150] sm:$0xff]
        %v385 = vld [vmem:[#allocation5 + $0x158] sm:$0xff]
        %v386 = vld [vmem:[#allocation5 + $0x160] sm:$0xff]
        %v387 = vld [vmem:[#allocation5 + $0x168] sm:$0xff]
        %v388 = vld [vmem:[#allocation5 + $0x170] sm:$0xff]
        %v389 = vld [vmem:[#allocation5 + $0x178] sm:$0xff]
        %v390 = vld [vmem:[#allocation5 + $0x180] sm:$0xff]
        %v391 = vld [vmem:[#allocation5 + $0x188] sm:$0xff]
        %v392 = vld [vmem:[#allocation5 + $0x190] sm:$0xff]
        %v393 = vld [vmem:[#allocation5 + $0x198] sm:$0xff]
        %v394 = vld [vmem:[#allocation5 + $0x1a0] sm:$0xff]
        %v395 = vld [vmem:[#allocation5 + $0x1a8] sm:$0xff]
        %v396 = vld [vmem:[#allocation5 + $0x1b0] sm:$0xff]
        %v397 = vld [vmem:[#allocation5 + $0x1b8] sm:$0xff]
        %v398 = vld [vmem:[#allocation5 + $0x1c0] sm:$0xff]
        %v399 = vld [vmem:[#allocation5 + $0x1c8] sm:$0xff]
        %v400 = vld [vmem:[#allocation5 + $0x1d0] sm:$0xff]
        %v401 = vld [vmem:[#allocation5 + $0x1d8] sm:$0xff]
        %v402 = vld [vmem:[#allocation5 + $0x1e0] sm:$0xff]
        %v403 = vld [vmem:[#allocation5 + $0x1e8] sm:$0xff]
        %v404 = vld [vmem:[#allocation5 + $0x1f0] sm:$0xff]
        %v405 = vld [vmem:[#allocation5 + $0x1f8] sm:$0xff]
        %v406 = vld [vmem:[#allocation5 + $0x200] sm:$0xff]
        %v407 = vld [vmem:[#allocation5 + $0x208] sm:$0xff]
        %v408 = vld [vmem:[#allocation5 + $0x210] sm:$0xff]
        %v409 = vld [vmem:[#allocation5 + $0x218] sm:$0xff]
        %v410 = vld [vmem:[#allocation5 + $0x220] sm:$0xff]
        %v411 = vld [vmem:[#allocation5 + $0x228] sm:$0xff]
        %v412 = vld [vmem:[#allocation5 + $0x230] sm:$0xff]
        %v413 = vld [vmem:[#allocation5 + $0x238] sm:$0xff]
        %v414 = vld [vmem:[#allocation5 + $0x240] sm:$0xff]
        %v415 = vld [vmem:[#allocation5 + $0x248] sm:$0xff]
        %v416 = vld [vmem:[#allocation5 + $0x250] sm:$0xff]
        %v417 = vld [vmem:[#allocation5 + $0x258] sm:$0xff]
        %v418 = vld [vmem:[#allocation5 + $0x260] sm:$0xff]
        %v419 = vld [vmem:[#allocation5 + $0x268] sm:$0xff]
        %v420 = vld [vmem:[#allocation5 + $0x270] sm:$0xff]
        %v421 = vld [vmem:[#allocation5 + $0x278] sm:$0xff]
        %v422 = vld [vmem:[#allocation5 + $0x280] sm:$0xff]
        %v423 = vld [vmem:[#allocation5 + $0x288] sm:$0xff]
        %v424 = vld [vmem:[#allocation5 + $0x290] sm:$0xff]
        %v425 = vld [vmem:[#allocation5 + $0x298] sm:$0xff]
        %v426 = vld [vmem:[#allocation5 + $0x2a0] sm:$0xff]
        %v427 = vld [vmem:[#allocation5 + $0x2a8] sm:$0xff]
        %v428 = vld [vmem:[#allocation5 + $0x2b0] sm:$0xff]
        %v429 = vld [vmem:[#allocation5 + $0x2b8] sm:$0xff]
        %v430 = vld [vmem:[#allocation5 + $0x2c0] sm:$0xff]
        %v431 = vld [vmem:[#allocation5 + $0x2c8] sm:$0xff]
        %v432 = vld [vmem:[#allocation5 + $0x2d0] sm:$0xff]
        %v433 = vld [vmem:[#allocation5 + $0x2d8] sm:$0xff]
        %v434 = vld [vmem:[#allocation5 + $0x2e0] sm:$0xff]
        %v435 = vld [vmem:[#allocation5 + $0x2e8] sm:$0xff]
        %v436 = vld [vmem:[#allocation5 + $0x2f0] sm:$0xff]
        %v437 = vld [vmem:[#allocation5 + $0x2f8] sm:$0xff]
        %v438 = vld [vmem:[#allocation5 + $0x300] sm:$0xff]
        %v439 = vld [vmem:[#allocation5 + $0x308] sm:$0xff]
        %v440 = vld [vmem:[#allocation5 + $0x310] sm:$0xff]
        %v441 = vld [vmem:[#allocation5 + $0x318] sm:$0xff]
        %v442 = vld [vmem:[#allocation5 + $0x320] sm:$0xff]
        %v443 = vld [vmem:[#allocation5 + $0x328] sm:$0xff]
        %v444 = vld [vmem:[#allocation5 + $0x330] sm:$0xff]
        %v445 = vld [vmem:[#allocation5 + $0x338] sm:$0xff]
        %v446 = vld [vmem:[#allocation5 + $0x340] sm:$0xff]
        %v447 = vld [vmem:[#allocation5 + $0x348] sm:$0xff]
        %v448 = vld [vmem:[#allocation5 + $0x350] sm:$0xff]
        %v449 = vld [vmem:[#allocation5 + $0x358] sm:$0xff]
        %v450 = vld [vmem:[#allocation5 + $0x360] sm:$0xff]
        %v451 = vld [vmem:[#allocation5 + $0x368] sm:$0xff]
        %v452 = vld [vmem:[#allocation5 + $0x370] sm:$0xff]
        %v453 = vld [vmem:[#allocation5 + $0x378] sm:$0xff]
        %v454 = vld [vmem:[#allocation5 + $0x380] sm:$0xff]
        %v455 = vld [vmem:[#allocation5 + $0x388] sm:$0xff]
        %v456 = vld [vmem:[#allocation5 + $0x390] sm:$0xff]
        %v457 = vld [vmem:[#allocation5 + $0x398] sm:$0xff]
        %v458 = vld [vmem:[#allocation5 + $0x3a0] sm:$0xff]
        %v459 = vld [vmem:[#allocation5 + $0x3a8] sm:$0xff]
        %v460 = vld [vmem:[#allocation5 + $0x3b0] sm:$0xff]
        %v461 = vld [vmem:[#allocation5 + $0x3b8] sm:$0xff]
        %v462 = vld [vmem:[#allocation5 + $0x3c0] sm:$0xff]
        %v463 = vld [vmem:[#allocation5 + $0x3c8] sm:$0xff]
        %v464 = vld [vmem:[#allocation5 + $0x3d0] sm:$0xff]
        %v465 = vld [vmem:[#allocation5 + $0x3d8] sm:$0xff]
        %v466 = vld [vmem:[#allocation5 + $0x3e0] sm:$0xff]
        %v467 = vld [vmem:[#allocation5 + $0x3e8] sm:$0xff]
        %v468 = vld [vmem:[#allocation5 + $0x3f0] sm:$0xff]
        %v469 = vld [vmem:[#allocation5 + $0x3f8] sm:$0xff]
        %v598 = vunpack.c.l.b16 %v342
        %v599 = vunpack.c.h.b16 %v342
        %v600 = vunpack.c.l.b16 %v343
        %v601 = vunpack.c.h.b16 %v343
        %v602 = vunpack.c.l.b16 %v344
        %v603 = vunpack.c.h.b16 %v344
        %v604 = vunpack.c.l.b16 %v345
        %v605 = vunpack.c.h.b16 %v345
        %v606 = vunpack.c.l.b16 %v346
        %v607 = vunpack.c.h.b16 %v346
        %v608 = vunpack.c.l.b16 %v347
        %v609 = vunpack.c.h.b16 %v347
        %v610 = vunpack.c.l.b16 %v348
        %v611 = vunpack.c.h.b16 %v348
        %v612 = vunpack.c.l.b16 %v349
        %v613 = vunpack.c.h.b16 %v349
        %v614 = vunpack.c.l.b16 %v350
        %v615 = vunpack.c.h.b16 %v350
        %v616 = vunpack.c.l.b16 %v351
        %v617 = vunpack.c.h.b16 %v351
        %v618 = vunpack.c.l.b16 %v352
        %v619 = vunpack.c.h.b16 %v352
        %v620 = vunpack.c.l.b16 %v353
        %v621 = vunpack.c.h.b16 %v353
        %v622 = vunpack.c.l.b16 %v354
        %v623 = vunpack.c.h.b16 %v354
        %v624 = vunpack.c.l.b16 %v355
        %v625 = vunpack.c.h.b16 %v355
        %v626 = vunpack.c.l.b16 %v356
        %v627 = vunpack.c.h.b16 %v356
        %v628 = vunpack.c.l.b16 %v357
        %v629 = vunpack.c.h.b16 %v357
        %v630 = vunpack.c.l.b16 %v358
        %v631 = vunpack.c.h.b16 %v358
        %v632 = vunpack.c.l.b16 %v359
        %v633 = vunpack.c.h.b16 %v359
        %v634 = vunpack.c.l.b16 %v360
        %v635 = vunpack.c.h.b16 %v360
        %v636 = vunpack.c.l.b16 %v361
        %v637 = vunpack.c.h.b16 %v361
        %v638 = vunpack.c.l.b16 %v362
        %v639 = vunpack.c.h.b16 %v362
        %v640 = vunpack.c.l.b16 %v363
        %v641 = vunpack.c.h.b16 %v363
        %v642 = vunpack.c.l.b16 %v364
        %v643 = vunpack.c.h.b16 %v364
        %v644 = vunpack.c.l.b16 %v365
        %v645 = vunpack.c.h.b16 %v365
        %v646 = vunpack.c.l.b16 %v366
        %v647 = vunpack.c.h.b16 %v366
        %v648 = vunpack.c.l.b16 %v367
        %v649 = vunpack.c.h.b16 %v367
        %v650 = vunpack.c.l.b16 %v368
        %v651 = vunpack.c.h.b16 %v368
        %v652 = vunpack.c.l.b16 %v369
        %v653 = vunpack.c.h.b16 %v369
        %v654 = vunpack.c.l.b16 %v370
        %v655 = vunpack.c.h.b16 %v370
        %v656 = vunpack.c.l.b16 %v371
        %v657 = vunpack.c.h.b16 %v371
        %v658 = vunpack.c.l.b16 %v372
        %v659 = vunpack.c.h.b16 %v372
        %v660 = vunpack.c.l.b16 %v373
        %v661 = vunpack.c.h.b16 %v373
        %v662 = vunpack.c.l.b16 %v374
        %v663 = vunpack.c.h.b16 %v374
        %v664 = vunpack.c.l.b16 %v375
        %v665 = vunpack.c.h.b16 %v375
        %v666 = vunpack.c.l.b16 %v376
        %v667 = vunpack.c.h.b16 %v376
        %v668 = vunpack.c.l.b16 %v377
        %v669 = vunpack.c.h.b16 %v377
        %v670 = vunpack.c.l.b16 %v378
        %v671 = vunpack.c.h.b16 %v378
        %v672 = vunpack.c.l.b16 %v379
        %v673 = vunpack.c.h.b16 %v379
        %v674 = vunpack.c.l.b16 %v380
        %v675 = vunpack.c.h.b16 %v380
        %v676 = vunpack.c.l.b16 %v381
        %v677 = vunpack.c.h.b16 %v381
        %v678 = vunpack.c.l.b16 %v382
        %v679 = vunpack.c.h.b16 %v382
        %v680 = vunpack.c.l.b16 %v383
        %v681 = vunpack.c.h.b16 %v383
        %v682 = vunpack.c.l.b16 %v384
        %v683 = vunpack.c.h.b16 %v384
        %v684 = vunpack.c.l.b16 %v385
        %v685 = vunpack.c.h.b16 %v385
        %v686 = vunpack.c.l.b16 %v386
        %v687 = vunpack.c.h.b16 %v386
        %v688 = vunpack.c.l.b16 %v387
        %v689 = vunpack.c.h.b16 %v387
        %v690 = vunpack.c.l.b16 %v388
        %v691 = vunpack.c.h.b16 %v388
        %v692 = vunpack.c.l.b16 %v389
        %v693 = vunpack.c.h.b16 %v389
        %v694 = vunpack.c.l.b16 %v390
        %v695 = vunpack.c.h.b16 %v390
        %v696 = vunpack.c.l.b16 %v391
        %v697 = vunpack.c.h.b16 %v391
        %v698 = vunpack.c.l.b16 %v392
        %v699 = vunpack.c.h.b16 %v392
        %v700 = vunpack.c.l.b16 %v393
        %v701 = vunpack.c.h.b16 %v393
        %v702 = vunpack.c.l.b16 %v394
        %v703 = vunpack.c.h.b16 %v394
        %v704 = vunpack.c.l.b16 %v395
        %v705 = vunpack.c.h.b16 %v395
        %v706 = vunpack.c.l.b16 %v396
        %v707 = vunpack.c.h.b16 %v396
        %v708 = vunpack.c.l.b16 %v397
        %v709 = vunpack.c.h.b16 %v397
        %v710 = vunpack.c.l.b16 %v398
        %v711 = vunpack.c.h.b16 %v398
        %v712 = vunpack.c.l.b16 %v399
        %v713 = vunpack.c.h.b16 %v399
        %v714 = vunpack.c.l.b16 %v400
        %v715 = vunpack.c.h.b16 %v400
        %v716 = vunpack.c.l.b16 %v401
        %v717 = vunpack.c.h.b16 %v401
        %v718 = vunpack.c.l.b16 %v402
        %v719 = vunpack.c.h.b16 %v402
        %v720 = vunpack.c.l.b16 %v403
        %v721 = vunpack.c.h.b16 %v403
        %v722 = vunpack.c.l.b16 %v404
        %v723 = vunpack.c.h.b16 %v404
        %v724 = vunpack.c.l.b16 %v405
        %v725 = vunpack.c.h.b16 %v405
        %v726 = vunpack.c.l.b16 %v406
        %v727 = vunpack.c.h.b16 %v406
        %v728 = vunpack.c.l.b16 %v407
        %v729 = vunpack.c.h.b16 %v407
        %v730 = vunpack.c.l.b16 %v408
        %v731 = vunpack.c.h.b16 %v408
        %v732 = vunpack.c.l.b16 %v409
        %v733 = vunpack.c.h.b16 %v409
        %v734 = vunpack.c.l.b16 %v410
        %v735 = vunpack.c.h.b16 %v410
        %v736 = vunpack.c.l.b16 %v411
        %v737 = vunpack.c.h.b16 %v411
        %v738 = vunpack.c.l.b16 %v412
        %v739 = vunpack.c.h.b16 %v412
        %v740 = vunpack.c.l.b16 %v413
        %v741 = vunpack.c.h.b16 %v413
        %v742 = vunpack.c.l.b16 %v414
        %v743 = vunpack.c.h.b16 %v414
        %v744 = vunpack.c.l.b16 %v415
        %v745 = vunpack.c.h.b16 %v415
        %v746 = vunpack.c.l.b16 %v416
        %v747 = vunpack.c.h.b16 %v416
        %v748 = vunpack.c.l.b16 %v417
        %v749 = vunpack.c.h.b16 %v417
        %v750 = vunpack.c.l.b16 %v418
        %v751 = vunpack.c.h.b16 %v418
        %v752 = vunpack.c.l.b16 %v419
        %v753 = vunpack.c.h.b16 %v419
        %v754 = vunpack.c.l.b16 %v420
        %v755 = vunpack.c.h.b16 %v420
        %v756 = vunpack.c.l.b16 %v421
        %v757 = vunpack.c.h.b16 %v421
        %v758 = vunpack.c.l.b16 %v422
        %v759 = vunpack.c.h.b16 %v422
        %v760 = vunpack.c.l.b16 %v423
        %v761 = vunpack.c.h.b16 %v423
        %v762 = vunpack.c.l.b16 %v424
        %v763 = vunpack.c.h.b16 %v424
        %v764 = vunpack.c.l.b16 %v425
        %v765 = vunpack.c.h.b16 %v425
        %v766 = vunpack.c.l.b16 %v426
        %v767 = vunpack.c.h.b16 %v426
        %v768 = vunpack.c.l.b16 %v427
        %v769 = vunpack.c.h.b16 %v427
        %v770 = vunpack.c.l.b16 %v428
        %v771 = vunpack.c.h.b16 %v428
        %v772 = vunpack.c.l.b16 %v429
        %v773 = vunpack.c.h.b16 %v429
        %v774 = vunpack.c.l.b16 %v430
        %v775 = vunpack.c.h.b16 %v430
        %v776 = vunpack.c.l.b16 %v431
        %v777 = vunpack.c.h.b16 %v431
        %v778 = vunpack.c.l.b16 %v432
        %v779 = vunpack.c.h.b16 %v432
        %v780 = vunpack.c.l.b16 %v433
        %v781 = vunpack.c.h.b16 %v433
        %v782 = vunpack.c.l.b16 %v434
        %v783 = vunpack.c.h.b16 %v434
        %v784 = vunpack.c.l.b16 %v435
        %v785 = vunpack.c.h.b16 %v435
        %v786 = vunpack.c.l.b16 %v436
        %v787 = vunpack.c.h.b16 %v436
        %v788 = vunpack.c.l.b16 %v437
        %v789 = vunpack.c.h.b16 %v437
        %v790 = vunpack.c.l.b16 %v438
        %v791 = vunpack.c.h.b16 %v438
        %v792 = vunpack.c.l.b16 %v439
        %v793 = vunpack.c.h.b16 %v439
        %v794 = vunpack.c.l.b16 %v440
        %v795 = vunpack.c.h.b16 %v440
        %v796 = vunpack.c.l.b16 %v441
        %v797 = vunpack.c.h.b16 %v441
        %v798 = vunpack.c.l.b16 %v442
        %v799 = vunpack.c.h.b16 %v442
        %v800 = vunpack.c.l.b16 %v443
        %v801 = vunpack.c.h.b16 %v443
        %v802 = vunpack.c.l.b16 %v444
        %v803 = vunpack.c.h.b16 %v444
        %v804 = vunpack.c.l.b16 %v445
        %v805 = vunpack.c.h.b16 %v445
        %v806 = vunpack.c.l.b16 %v446
        %v807 = vunpack.c.h.b16 %v446
        %v808 = vunpack.c.l.b16 %v447
        %v809 = vunpack.c.h.b16 %v447
        %v810 = vunpack.c.l.b16 %v448
        %v811 = vunpack.c.h.b16 %v448
        %v812 = vunpack.c.l.b16 %v449
        %v813 = vunpack.c.h.b16 %v449
        %v814 = vunpack.c.l.b16 %v450
        %v815 = vunpack.c.h.b16 %v450
        %v816 = vunpack.c.l.b16 %v451
        %v817 = vunpack.c.h.b16 %v451
        %v818 = vunpack.c.l.b16 %v452
        %v819 = vunpack.c.h.b16 %v452
        %v820 = vunpack.c.l.b16 %v453
        %v821 = vunpack.c.h.b16 %v453
        %v822 = vunpack.c.l.b16 %v454
        %v823 = vunpack.c.h.b16 %v454
        %v824 = vunpack.c.l.b16 %v455
        %v825 = vunpack.c.h.b16 %v455
        %v826 = vunpack.c.l.b16 %v456
        %v827 = vunpack.c.h.b16 %v456
        %v828 = vunpack.c.l.b16 %v457
        %v829 = vunpack.c.h.b16 %v457
        %v830 = vunpack.c.l.b16 %v458
        %v831 = vunpack.c.h.b16 %v458
        %v832 = vunpack.c.l.b16 %v459
        %v833 = vunpack.c.h.b16 %v459
        %v834 = vunpack.c.l.b16 %v460
        %v835 = vunpack.c.h.b16 %v460
        %v836 = vunpack.c.l.b16 %v461
        %v837 = vunpack.c.h.b16 %v461
        %v838 = vunpack.c.l.b16 %v462
        %v839 = vunpack.c.h.b16 %v462
        %v840 = vunpack.c.l.b16 %v463
        %v841 = vunpack.c.h.b16 %v463
        %v842 = vunpack.c.l.b16 %v464
        %v843 = vunpack.c.h.b16 %v464
        %v844 = vunpack.c.l.b16 %v465
        %v845 = vunpack.c.h.b16 %v465
        %v846 = vunpack.c.l.b16 %v466
        %v847 = vunpack.c.h.b16 %v466
        %v848 = vunpack.c.l.b16 %v467
        %v849 = vunpack.c.h.b16 %v467
        %v850 = vunpack.c.l.b16 %v468
        %v851 = vunpack.c.h.b16 %v468
        %v852 = vunpack.c.l.b16 %v469
        %v853 = vunpack.c.h.b16 %v469
        %v854 = vpack.c.b16 %v606, %v598
        %v855 = vpack.c.b16 %v607, %v599
        %v856 = vpack.c.b16 %v608, %v600
        %v857 = vpack.c.b16 %v609, %v601
        %v858 = vpack.c.b16 %v610, %v602
        %v859 = vpack.c.b16 %v611, %v603
        %v860 = vpack.c.b16 %v612, %v604
        %v861 = vpack.c.b16 %v613, %v605
        %v862 = vpack.c.b16 %v622, %v614
        %v863 = vpack.c.b16 %v623, %v615
        %v864 = vpack.c.b16 %v624, %v616
        %v865 = vpack.c.b16 %v625, %v617
        %v866 = vpack.c.b16 %v626, %v618
        %v867 = vpack.c.b16 %v627, %v619
        %v868 = vpack.c.b16 %v628, %v620
        %v869 = vpack.c.b16 %v629, %v621
        %v870 = vpack.c.b16 %v638, %v630
        %v871 = vpack.c.b16 %v639, %v631
        %v872 = vpack.c.b16 %v640, %v632
        %v873 = vpack.c.b16 %v641, %v633
        %v874 = vpack.c.b16 %v642, %v634
        %v875 = vpack.c.b16 %v643, %v635
        %v876 = vpack.c.b16 %v644, %v636
        %v877 = vpack.c.b16 %v645, %v637
        %v878 = vpack.c.b16 %v654, %v646
        %v879 = vpack.c.b16 %v655, %v647
        %v880 = vpack.c.b16 %v656, %v648
        %v881 = vpack.c.b16 %v657, %v649
        %v882 = vpack.c.b16 %v658, %v650
        %v883 = vpack.c.b16 %v659, %v651
        %v884 = vpack.c.b16 %v660, %v652
        %v885 = vpack.c.b16 %v661, %v653
        %v886 = vpack.c.b16 %v670, %v662
        %v887 = vpack.c.b16 %v671, %v663
        %v888 = vpack.c.b16 %v672, %v664
        %v889 = vpack.c.b16 %v673, %v665
        %v890 = vpack.c.b16 %v674, %v666
        %v891 = vpack.c.b16 %v675, %v667
        %v892 = vpack.c.b16 %v676, %v668
        %v893 = vpack.c.b16 %v677, %v669
        %v894 = vpack.c.b16 %v686, %v678
        %v895 = vpack.c.b16 %v687, %v679
        %v896 = vpack.c.b16 %v688, %v680
        %v897 = vpack.c.b16 %v689, %v681
        %v898 = vpack.c.b16 %v690, %v682
        %v899 = vpack.c.b16 %v691, %v683
        %v900 = vpack.c.b16 %v692, %v684
        %v901 = vpack.c.b16 %v693, %v685
        %v902 = vpack.c.b16 %v702, %v694
        %v903 = vpack.c.b16 %v703, %v695
        %v904 = vpack.c.b16 %v704, %v696
        %v905 = vpack.c.b16 %v705, %v697
        %v906 = vpack.c.b16 %v706, %v698
        %v907 = vpack.c.b16 %v707, %v699
        %v908 = vpack.c.b16 %v708, %v700
        %v909 = vpack.c.b16 %v709, %v701
        %v910 = vpack.c.b16 %v718, %v710
        %v911 = vpack.c.b16 %v719, %v711
        %v912 = vpack.c.b16 %v720, %v712
        %v913 = vpack.c.b16 %v721, %v713
        %v914 = vpack.c.b16 %v722, %v714
        %v915 = vpack.c.b16 %v723, %v715
        %v916 = vpack.c.b16 %v724, %v716
        %v917 = vpack.c.b16 %v725, %v717
        %v918 = vpack.c.b16 %v734, %v726
        %v919 = vpack.c.b16 %v735, %v727
        %v920 = vpack.c.b16 %v736, %v728
        %v921 = vpack.c.b16 %v737, %v729
        %v922 = vpack.c.b16 %v738, %v730
        %v923 = vpack.c.b16 %v739, %v731
        %v924 = vpack.c.b16 %v740, %v732
        %v925 = vpack.c.b16 %v741, %v733
        %v926 = vpack.c.b16 %v750, %v742
        %v927 = vpack.c.b16 %v751, %v743
        %v928 = vpack.c.b16 %v752, %v744
        %v929 = vpack.c.b16 %v753, %v745
        %v930 = vpack.c.b16 %v754, %v746
        %v931 = vpack.c.b16 %v755, %v747
        %v932 = vpack.c.b16 %v756, %v748
        %v933 = vpack.c.b16 %v757, %v749
        %v934 = vpack.c.b16 %v766, %v758
        %v935 = vpack.c.b16 %v767, %v759
        %v936 = vpack.c.b16 %v768, %v760
        %v937 = vpack.c.b16 %v769, %v761
        %v938 = vpack.c.b16 %v770, %v762
        %v939 = vpack.c.b16 %v771, %v763
        %v940 = vpack.c.b16 %v772, %v764
        %v941 = vpack.c.b16 %v773, %v765
        %v942 = vpack.c.b16 %v782, %v774
        %v943 = vpack.c.b16 %v783, %v775
        %v944 = vpack.c.b16 %v784, %v776
        %v945 = vpack.c.b16 %v785, %v777
        %v946 = vpack.c.b16 %v786, %v778
        %v947 = vpack.c.b16 %v787, %v779
        %v948 = vpack.c.b16 %v788, %v780
        %v949 = vpack.c.b16 %v789, %v781
        %v950 = vpack.c.b16 %v798, %v790
        %v951 = vpack.c.b16 %v799, %v791
        %v952 = vpack.c.b16 %v800, %v792
        %v953 = vpack.c.b16 %v801, %v793
        %v954 = vpack.c.b16 %v802, %v794
        %v955 = vpack.c.b16 %v803, %v795
        %v956 = vpack.c.b16 %v804, %v796
        %v957 = vpack.c.b16 %v805, %v797
        %v958 = vpack.c.b16 %v814, %v806
        %v959 = vpack.c.b16 %v815, %v807
        %v960 = vpack.c.b16 %v816, %v808
        %v961 = vpack.c.b16 %v817, %v809
        %v962 = vpack.c.b16 %v818, %v810
        %v963 = vpack.c.b16 %v819, %v811
        %v964 = vpack.c.b16 %v820, %v812
        %v965 = vpack.c.b16 %v821, %v813
        %v966 = vpack.c.b16 %v830, %v822
        %v967 = vpack.c.b16 %v831, %v823
        %v968 = vpack.c.b16 %v832, %v824
        %v969 = vpack.c.b16 %v833, %v825
        %v970 = vpack.c.b16 %v834, %v826
        %v971 = vpack.c.b16 %v835, %v827
        %v972 = vpack.c.b16 %v836, %v828
        %v973 = vpack.c.b16 %v837, %v829
        %v974 = vpack.c.b16 %v846, %v838
        %v975 = vpack.c.b16 %v847, %v839
        %v976 = vpack.c.b16 %v848, %v840
        %v977 = vpack.c.b16 %v849, %v841
        %v978 = vpack.c.b16 %v850, %v842
        %v979 = vpack.c.b16 %v851, %v843
        %v980 = vpack.c.b16 %v852, %v844
        %v981 = vpack.c.b16 %v853, %v845
        %1110 = vmatprep.subr.bf16.mxu0 %v855
        %1111 = vmatpush1.bf16.msra.mxu0 %v854
        %1112 = vmatprep.subr.bf16.mxu0 %v863
        %1113 = vmatpush1.bf16.msra.mxu0 %v862
        %1114 = vmatprep.subr.bf16.mxu0 %v871
        %1115 = vmatpush1.bf16.msra.mxu0 %v870
        %1116 = vmatprep.subr.bf16.mxu0 %v879
        %1117 = vmatpush1.bf16.msra.mxu0 %v878
        %1118 = vmatprep.subr.bf16.mxu0 %v887
        %1119 = vmatpush1.bf16.msra.mxu0 %v886
        %1120 = vmatprep.subr.bf16.mxu0 %v895
        %1121 = vmatpush1.bf16.msra.mxu0 %v894
        %1122 = vmatprep.subr.bf16.mxu0 %v903
        %1123 = vmatpush1.bf16.msra.mxu0 %v902
        %1124 = vmatprep.subr.bf16.mxu0 %v911
        %1125 = vmatpush1.bf16.msra.mxu0 %v910
        %1126 = vmatprep.subr.bf16.mxu0 %v919
        %1127 = vmatpush1.bf16.msra.mxu0 %v918
        %1128 = vmatprep.subr.bf16.mxu0 %v927
        %1129 = vmatpush1.bf16.msra.mxu0 %v926
        %1130 = vmatprep.subr.bf16.mxu0 %v935
        %1131 = vmatpush1.bf16.msra.mxu0 %v934
        %1132 = vmatprep.subr.bf16.mxu0 %v943
        %1133 = vmatpush1.bf16.msra.mxu0 %v942
        %1134 = vmatprep.subr.bf16.mxu0 %v951
        %1135 = vmatpush1.bf16.msra.mxu0 %v950
        %1136 = vmatprep.subr.bf16.mxu0 %v959
        %1137 = vmatpush1.bf16.msra.mxu0 %v958
        %1138 = vmatprep.subr.bf16.mxu0 %v967
        %1139 = vmatpush1.bf16.msra.mxu0 %v966
        %1140 = vmatprep.subr.bf16.mxu0 %v975
        %1141 = vmatpush1.bf16.msra.mxu0 %v974
        %1142 = vmatprep.mubr.bf16.mxu0 %v341
        %1143 = vmatmul.mubr.bf16.gmra.mrb[0].mxu0 %v340
        %v1144 = vpop.f32.mrb[0].mxu0
        %v1145 = vadd.f32 0.0, %v1144
        %v1146 = vpop.f32.mrb[0].mxu0
        %v1147 = vadd.f32 0.0, %v1146
        %v1148 = vpop.f32.mrb[0].mxu0
        %v1149 = vpop.f32.mrb[0].mxu0
        %1150 = vdwg.mxu0
        %1151 = vmatprep.subr.bf16.mxu0 %v857
        %1152 = vmatpush1.bf16.msra.mxu0 %v856
        %1153 = vmatprep.subr.bf16.mxu0 %v865
        %1154 = vmatpush1.bf16.msra.mxu0 %v864
        %1155 = vmatprep.subr.bf16.mxu0 %v873
        %1156 = vmatpush1.bf16.msra.mxu0 %v872
        %1157 = vmatprep.subr.bf16.mxu0 %v881
        %1158 = vmatpush1.bf16.msra.mxu0 %v880
        %1159 = vmatprep.subr.bf16.mxu0 %v889
        %1160 = vmatpush1.bf16.msra.mxu0 %v888
        %1161 = vmatprep.subr.bf16.mxu0 %v897
        %1162 = vmatpush1.bf16.msra.mxu0 %v896
        %1163 = vmatprep.subr.bf16.mxu0 %v905
        %1164 = vmatpush1.bf16.msra.mxu0 %v904
        %1165 = vmatprep.subr.bf16.mxu0 %v913
        %1166 = vmatpush1.bf16.msra.mxu0 %v912
        %1167 = vmatprep.subr.bf16.mxu0 %v921
        %1168 = vmatpush1.bf16.msra.mxu0 %v920
        %1169 = vmatprep.subr.bf16.mxu0 %v929
        %1170 = vmatpush1.bf16.msra.mxu0 %v928
        %1171 = vmatprep.subr.bf16.mxu0 %v937
        %1172 = vmatpush1.bf16.msra.mxu0 %v936
        %1173 = vmatprep.subr.bf16.mxu0 %v945
        %1174 = vmatpush1.bf16.msra.mxu0 %v944
        %1175 = vmatprep.subr.bf16.mxu0 %v953
        %1176 = vmatpush1.bf16.msra.mxu0 %v952
        %1177 = vmatprep.subr.bf16.mxu0 %v961
        %1178 = vmatpush1.bf16.msra.mxu0 %v960
        %1179 = vmatprep.subr.bf16.mxu0 %v969
        %1180 = vmatpush1.bf16.msra.mxu0 %v968
        %1181 = vmatprep.subr.bf16.mxu0 %v977
        %1182 = vmatpush1.bf16.msra.mxu0 %v976
        %1183 = vmatprep.mubr.bf16.mxu0 %v341
        %1184 = vmatmul.mubr.bf16.gmra.mrb[0].mxu0 %v340
        %v1185 = vpop.f32.mrb[0].mxu0
        %v1186 = vadd.f32 0.0, %v1185
        %v1187 = vpop.f32.mrb[0].mxu0
        %v1188 = vadd.f32 0.0, %v1187
        %v1189 = vpop.f32.mrb[0].mxu0
        %v1190 = vpop.f32.mrb[0].mxu0
        %1191 = vdwg.mxu0
        %1192 = vmatprep.subr.bf16.mxu0 %v859
        %1193 = vmatpush1.bf16.msra.mxu0 %v858
        %1194 = vmatprep.subr.bf16.mxu0 %v867
        %1195 = vmatpush1.bf16.msra.mxu0 %v866
        %1196 = vmatprep.subr.bf16.mxu0 %v875
        %1197 = vmatpush1.bf16.msra.mxu0 %v874
        %1198 = vmatprep.subr.bf16.mxu0 %v883
        %1199 = vmatpush1.bf16.msra.mxu0 %v882
        %1200 = vmatprep.subr.bf16.mxu0 %v891
        %1201 = vmatpush1.bf16.msra.mxu0 %v890
        %1202 = vmatprep.subr.bf16.mxu0 %v899
        %1203 = vmatpush1.bf16.msra.mxu0 %v898
        %1204 = vmatprep.subr.bf16.mxu0 %v907
        %1205 = vmatpush1.bf16.msra.mxu0 %v906
        %1206 = vmatprep.subr.bf16.mxu0 %v915
        %1207 = vmatpush1.bf16.msra.mxu0 %v914
        %1208 = vmatprep.subr.bf16.mxu0 %v923
        %1209 = vmatpush1.bf16.msra.mxu0 %v922
        %1210 = vmatprep.subr.bf16.mxu0 %v931
        %1211 = vmatpush1.bf16.msra.mxu0 %v930
        %1212 = vmatprep.subr.bf16.mxu0 %v939
        %1213 = vmatpush1.bf16.msra.mxu0 %v938
        %1214 = vmatprep.subr.bf16.mxu0 %v947
        %1215 = vmatpush1.bf16.msra.mxu0 %v946
        %1216 = vmatprep.subr.bf16.mxu0 %v955
        %1217 = vmatpush1.bf16.msra.mxu0 %v954
        %1218 = vmatprep.subr.bf16.mxu0 %v963
        %1219 = vmatpush1.bf16.msra.mxu0 %v962
        %1220 = vmatprep.subr.bf16.mxu0 %v971
        %1221 = vmatpush1.bf16.msra.mxu0 %v970
        %1222 = vmatprep.subr.bf16.mxu0 %v979
        %1223 = vmatpush1.bf16.msra.mxu0 %v978
        %1224 = vmatprep.mubr.bf16.mxu0 %v341
        %1225 = vmatmul.mubr.bf16.gmra.mrb[0].mxu0 %v340
        %v1226 = vpop.f32.mrb[0].mxu0
        %v1227 = vadd.f32 0.0, %v1226
        %v1228 = vpop.f32.mrb[0].mxu0
        %v1229 = vadd.f32 0.0, %v1228
        %v1230 = vpop.f32.mrb[0].mxu0
        %v1231 = vpop.f32.mrb[0].mxu0
        %1232 = vdwg.mxu0
        %1233 = vmatprep.subr.bf16.mxu0 %v861
        %1234 = vmatpush1.bf16.msra.mxu0 %v860
        %1235 = vmatprep.subr.bf16.mxu0 %v869
        %1236 = vmatpush1.bf16.msra.mxu0 %v868
        %1237 = vmatprep.subr.bf16.mxu0 %v877
        %1238 = vmatpush1.bf16.msra.mxu0 %v876
        %1239 = vmatprep.subr.bf16.mxu0 %v885
        %1240 = vmatpush1.bf16.msra.mxu0 %v884
        %1241 = vmatprep.subr.bf16.mxu0 %v893
        %1242 = vmatpush1.bf16.msra.mxu0 %v892
        %1243 = vmatprep.subr.bf16.mxu0 %v901
        %1244 = vmatpush1.bf16.msra.mxu0 %v900
        %1245 = vmatprep.subr.bf16.mxu0 %v909
        %1246 = vmatpush1.bf16.msra.mxu0 %v908
        %1247 = vmatprep.subr.bf16.mxu0 %v917
        %1248 = vmatpush1.bf16.msra.mxu0 %v916
        %1249 = vmatprep.subr.bf16.mxu0 %v925
        %1250 = vmatpush1.bf16.msra.mxu0 %v924
        %1251 = vmatprep.subr.bf16.mxu0 %v933
        %1252 = vmatpush1.bf16.msra.mxu0 %v932
        %1253 = vmatprep.subr.bf16.mxu0 %v941
        %1254 = vmatpush1.bf16.msra.mxu0 %v940
        %1255 = vmatprep.subr.bf16.mxu0 %v949
        %1256 = vmatpush1.bf16.msra.mxu0 %v948
        %1257 = vmatprep.subr.bf16.mxu0 %v957
        %1258 = vmatpush1.bf16.msra.mxu0 %v956
        %1259 = vmatprep.subr.bf16.mxu0 %v965
        %1260 = vmatpush1.bf16.msra.mxu0 %v964
        %1261 = vmatprep.subr.bf16.mxu0 %v973
        %1262 = vmatpush1.bf16.msra.mxu0 %v972
        %1263 = vmatprep.subr.bf16.mxu0 %v981
        %1264 = vmatpush1.bf16.msra.mxu0 %v980
        %1265 = vmatprep.mubr.bf16.mxu0 %v341
        %1266 = vmatmul.mubr.bf16.gmra.mrb[0].mxu0 %v340
        %v1267 = vpop.f32.mrb[0].mxu0
        %v1268 = vadd.f32 0.0, %v1267
        %v1269 = vpop.f32.mrb[0].mxu0
        %v1270 = vadd.f32 0.0, %v1269
        %v1271 = vpop.f32.mrb[0].mxu0
        %v1272 = vpop.f32.mrb[0].mxu0
        %1273 = vdwg.mxu0
        %v1274 = vpack.c.bf16 %v1145, %v1145
        %v1275 = vpack.c.bf16 %v1147, %v1147
        %v1276 = vpack.c.bf16 %v1186, %v1186
        %v1277 = vpack.c.bf16 %v1188, %v1188
        %v1278 = vpack.c.bf16 %v1227, %v1227
        %v1279 = vpack.c.bf16 %v1229, %v1229
        %v1280 = vpack.c.bf16 %v1268, %v1268
        %v1281 = vpack.c.bf16 %v1270, %v1270
        %v1282 = vld [vmem:[#allocation7] sm:$0xff]
        %v1284 = vcombine.high %v1282, %v1282
        %v1286 = vunpack.c.l.s4 1966171168
        %v1287 = vunpack.c.0.s8 %v1286
        %v1288 = vlaneseq
        %v1289 = vshrl.u32 %v1288, 7
        %v1290 = vsub.s32 %v1287, %v1289
        %v1291 = vrot.slane %v1282, %v1290
        %v1293 = vunpack.c.l.s4 1966171168
        %v1294 = vunpack.c.0.s8 %v1293
        %v1295 = vlaneseq
        %v1296 = vshrl.u32 %v1295, 7
        %v1297 = vsub.s32 %v1294, %v1296
        %v1298 = vrot.slane %v1284, %v1297
        %v1299 = vcombine.high %v1291, %v1291
        %v1300 = vcombine.high %v1298, %v1298
        %v1302 = vunpack.c.l.s4 1966171168
        %v1303 = vunpack.c.0.s8 %v1302
        %v1304 = vlaneseq
        %v1305 = vshrl.u32 %v1304, 7
        %v1306 = vsub.s32 %v1303, %v1305
        %v1307 = vrot.slane %v1291, %v1306
        %v1309 = vunpack.c.l.s4 1966171168
        %v1310 = vunpack.c.0.s8 %v1309
        %v1311 = vlaneseq
        %v1312 = vshrl.u32 %v1311, 7
        %v1313 = vsub.s32 %v1310, %v1312
        %v1314 = vrot.slane %v1298, %v1313
        %v1316 = vunpack.c.l.s4 1966171168
        %v1317 = vunpack.c.0.s8 %v1316
        %v1318 = vlaneseq
        %v1319 = vshrl.u32 %v1318, 7
        %v1320 = vsub.s32 %v1317, %v1319
        %v1321 = vrot.slane %v1299, %v1320
        %v1323 = vunpack.c.l.s4 1966171168
        %v1324 = vunpack.c.0.s8 %v1323
        %v1325 = vlaneseq
        %v1326 = vshrl.u32 %v1325, 7
        %v1327 = vsub.s32 %v1324, %v1326
        %v1328 = vrot.slane %v1300, %v1327
        %v1329 = vcombine.high %v1307, %v1307
        %v1330 = vcombine.high %v1314, %v1314
        %v1331 = vcombine.high %v1321, %v1321
        %v1332 = vcombine.high %v1328, %v1328
        %v1334 = vpack.i.b16 %v1307, %v1307
        %v1336 = vlaneseq
        %v1337 = vshrl.u32 %v1336, 7
        %v1338 = vsub.s32 0, %v1337
        %v1339 = vrot.slane %v1334, %v1338
        %v1341 = vpack.i.b16 %v1321, %v1321
        %v1343 = vlaneseq
        %v1344 = vshrl.u32 %v1343, 7
        %v1345 = vsub.s32 0, %v1344
        %v1346 = vrot.slane %v1341, %v1345
        %v1348 = vpack.i.b16 %v1329, %v1329
        %v1350 = vlaneseq
        %v1351 = vshrl.u32 %v1350, 7
        %v1352 = vsub.s32 0, %v1351
        %v1353 = vrot.slane %v1348, %v1352
        %v1355 = vpack.i.b16 %v1331, %v1331
        %v1357 = vlaneseq
        %v1358 = vshrl.u32 %v1357, 7
        %v1359 = vsub.s32 0, %v1358
        %v1360 = vrot.slane %v1355, %v1359
        %v1362 = vpack.i.b16 %v1314, %v1314
        %v1364 = vlaneseq
        %v1365 = vshrl.u32 %v1364, 7
        %v1366 = vsub.s32 0, %v1365
        %v1367 = vrot.slane %v1362, %v1366
        %v1369 = vpack.i.b16 %v1328, %v1328
        %v1371 = vlaneseq
        %v1372 = vshrl.u32 %v1371, 7
        %v1373 = vsub.s32 0, %v1372
        %v1374 = vrot.slane %v1369, %v1373
        %v1376 = vpack.i.b16 %v1330, %v1330
        %v1378 = vlaneseq
        %v1379 = vshrl.u32 %v1378, 7
        %v1380 = vsub.s32 0, %v1379
        %v1381 = vrot.slane %v1376, %v1380
        %v1383 = vpack.i.b16 %v1332, %v1332
        %v1385 = vlaneseq
        %v1386 = vshrl.u32 %v1385, 7
        %v1387 = vsub.s32 0, %v1386
        %v1388 = vrot.slane %v1383, %v1387
        %v1389 = vadd.bf16 %v1274, %v1339
        %v1390 = vadd.bf16 %v1275, %v1346
        %v1391 = vadd.bf16 %v1276, %v1353
        %v1392 = vadd.bf16 %v1277, %v1360
        %v1393 = vadd.bf16 %v1278, %v1367
        %v1394 = vadd.bf16 %v1279, %v1374
        %v1395 = vadd.bf16 %v1280, %v1381
        %v1396 = vadd.bf16 %v1281, %v1388
        %v1397 = vmax.bf16 %v1389, 0
        %v1398 = vmax.bf16 %v1390, 0
        %v1399 = vmax.bf16 %v1391, 0
        %v1400 = vmax.bf16 %v1392, 0
        %v1401 = vmax.bf16 %v1393, 0
        %v1402 = vmax.bf16 %v1394, 0
        %v1403 = vmax.bf16 %v1395, 0
        %v1404 = vmax.bf16 %v1396, 0
        %v1405 = vld [vmem:[#allocation8] sm:$0xff]
        %v1406 = vld [vmem:[#allocation8 + $0x8] sm:$0xff]
        %v1407 = vld [vmem:[#allocation8 + $0x10] sm:$0xff]
        %v1408 = vld [vmem:[#allocation8 + $0x18] sm:$0xff]
        %v1409 = vld [vmem:[#allocation8 + $0x20] sm:$0xff]
        %v1410 = vld [vmem:[#allocation8 + $0x28] sm:$0xff]
        %v1411 = vld [vmem:[#allocation8 + $0x30] sm:$0xff]
        %v1412 = vld [vmem:[#allocation8 + $0x38] sm:$0xff]
        %v1413 = vld [vmem:[#allocation8 + $0x40] sm:$0xff]
        %v1414 = vld [vmem:[#allocation8 + $0x48] sm:$0xff]
        %v1415 = vld [vmem:[#allocation8 + $0x50] sm:$0xff]
        %v1416 = vld [vmem:[#allocation8 + $0x58] sm:$0xff]
        %v1417 = vld [vmem:[#allocation8 + $0x60] sm:$0xff]
        %v1418 = vld [vmem:[#allocation8 + $0x68] sm:$0xff]
        %v1419 = vld [vmem:[#allocation8 + $0x70] sm:$0xff]
        %v1420 = vld [vmem:[#allocation8 + $0x78] sm:$0xff]
        %v1421 = vld [vmem:[#allocation8 + $0x80] sm:$0xff]
        %v1422 = vld [vmem:[#allocation8 + $0x88] sm:$0xff]
        %v1423 = vld [vmem:[#allocation8 + $0x90] sm:$0xff]
        %v1424 = vld [vmem:[#allocation8 + $0x98] sm:$0xff]
        %v1425 = vld [vmem:[#allocation8 + $0xa0] sm:$0xff]
        %v1426 = vld [vmem:[#allocation8 + $0xa8] sm:$0xff]
        %v1427 = vld [vmem:[#allocation8 + $0xb0] sm:$0xff]
        %v1428 = vld [vmem:[#allocation8 + $0xb8] sm:$0xff]
        %v1429 = vld [vmem:[#allocation8 + $0xc0] sm:$0xff]
        %v1430 = vld [vmem:[#allocation8 + $0xc8] sm:$0xff]
        %v1431 = vld [vmem:[#allocation8 + $0xd0] sm:$0xff]
        %v1432 = vld [vmem:[#allocation8 + $0xd8] sm:$0xff]
        %v1433 = vld [vmem:[#allocation8 + $0xe0] sm:$0xff]
        %v1434 = vld [vmem:[#allocation8 + $0xe8] sm:$0xff]
        %v1435 = vld [vmem:[#allocation8 + $0xf0] sm:$0xff]
        %v1436 = vld [vmem:[#allocation8 + $0xf8] sm:$0xff]
        %v1437 = vld [vmem:[#allocation8 + $0x100] sm:$0xff]
        %v1438 = vld [vmem:[#allocation8 + $0x108] sm:$0xff]
        %v1439 = vld [vmem:[#allocation8 + $0x110] sm:$0xff]
        %v1440 = vld [vmem:[#allocation8 + $0x118] sm:$0xff]
        %v1441 = vld [vmem:[#allocation8 + $0x120] sm:$0xff]
        %v1442 = vld [vmem:[#allocation8 + $0x128] sm:$0xff]
        %v1443 = vld [vmem:[#allocation8 + $0x130] sm:$0xff]
        %v1444 = vld [vmem:[#allocation8 + $0x138] sm:$0xff]
        %v1445 = vld [vmem:[#allocation8 + $0x140] sm:$0xff]
        %v1446 = vld [vmem:[#allocation8 + $0x148] sm:$0xff]
        %v1447 = vld [vmem:[#allocation8 + $0x150] sm:$0xff]
        %v1448 = vld [vmem:[#allocation8 + $0x158] sm:$0xff]
        %v1449 = vld [vmem:[#allocation8 + $0x160] sm:$0xff]
        %v1450 = vld [vmem:[#allocation8 + $0x168] sm:$0xff]
        %v1451 = vld [vmem:[#allocation8 + $0x170] sm:$0xff]
        %v1452 = vld [vmem:[#allocation8 + $0x178] sm:$0xff]
        %v1453 = vld [vmem:[#allocation8 + $0x180] sm:$0xff]
        %v1454 = vld [vmem:[#allocation8 + $0x188] sm:$0xff]
        %v1455 = vld [vmem:[#allocation8 + $0x190] sm:$0xff]
        %v1456 = vld [vmem:[#allocation8 + $0x198] sm:$0xff]
        %v1457 = vld [vmem:[#allocation8 + $0x1a0] sm:$0xff]
        %v1458 = vld [vmem:[#allocation8 + $0x1a8] sm:$0xff]
        %v1459 = vld [vmem:[#allocation8 + $0x1b0] sm:$0xff]
        %v1460 = vld [vmem:[#allocation8 + $0x1b8] sm:$0xff]
        %v1461 = vld [vmem:[#allocation8 + $0x1c0] sm:$0xff]
        %v1462 = vld [vmem:[#allocation8 + $0x1c8] sm:$0xff]
        %v1463 = vld [vmem:[#allocation8 + $0x1d0] sm:$0xff]
        %v1464 = vld [vmem:[#allocation8 + $0x1d8] sm:$0xff]
        %v1465 = vld [vmem:[#allocation8 + $0x1e0] sm:$0xff]
        %v1466 = vld [vmem:[#allocation8 + $0x1e8] sm:$0xff]
        %v1467 = vld [vmem:[#allocation8 + $0x1f0] sm:$0xff]
        %v1468 = vld [vmem:[#allocation8 + $0x1f8] sm:$0xff]
        %v1469 = vld [vmem:[#allocation8 + $0x200] sm:$0xff]
        %v1470 = vld [vmem:[#allocation8 + $0x208] sm:$0xff]
        %v1471 = vld [vmem:[#allocation8 + $0x210] sm:$0xff]
        %v1472 = vld [vmem:[#allocation8 + $0x218] sm:$0xff]
        %v1473 = vld [vmem:[#allocation8 + $0x220] sm:$0xff]
        %v1474 = vld [vmem:[#allocation8 + $0x228] sm:$0xff]
        %v1475 = vld [vmem:[#allocation8 + $0x230] sm:$0xff]
        %v1476 = vld [vmem:[#allocation8 + $0x238] sm:$0xff]
        %v1477 = vld [vmem:[#allocation8 + $0x240] sm:$0xff]
        %v1478 = vld [vmem:[#allocation8 + $0x248] sm:$0xff]
        %v1479 = vld [vmem:[#allocation8 + $0x250] sm:$0xff]
        %v1480 = vld [vmem:[#allocation8 + $0x258] sm:$0xff]
        %v1481 = vld [vmem:[#allocation8 + $0x260] sm:$0xff]
        %v1482 = vld [vmem:[#allocation8 + $0x268] sm:$0xff]
        %v1483 = vld [vmem:[#allocation8 + $0x270] sm:$0xff]
        %v1484 = vld [vmem:[#allocation8 + $0x278] sm:$0xff]
        %v1485 = vld [vmem:[#allocation8 + $0x280] sm:$0xff]
        %v1486 = vld [vmem:[#allocation8 + $0x288] sm:$0xff]
        %v1487 = vld [vmem:[#allocation8 + $0x290] sm:$0xff]
        %v1488 = vld [vmem:[#allocation8 + $0x298] sm:$0xff]
        %v1489 = vld [vmem:[#allocation8 + $0x2a0] sm:$0xff]
        %v1490 = vld [vmem:[#allocation8 + $0x2a8] sm:$0xff]
        %v1491 = vld [vmem:[#allocation8 + $0x2b0] sm:$0xff]
        %v1492 = vld [vmem:[#allocation8 + $0x2b8] sm:$0xff]
        %v1493 = vld [vmem:[#allocation8 + $0x2c0] sm:$0xff]
        %v1494 = vld [vmem:[#allocation8 + $0x2c8] sm:$0xff]
        %v1495 = vld [vmem:[#allocation8 + $0x2d0] sm:$0xff]
        %v1496 = vld [vmem:[#allocation8 + $0x2d8] sm:$0xff]
        %v1497 = vld [vmem:[#allocation8 + $0x2e0] sm:$0xff]
        %v1498 = vld [vmem:[#allocation8 + $0x2e8] sm:$0xff]
        %v1499 = vld [vmem:[#allocation8 + $0x2f0] sm:$0xff]
        %v1500 = vld [vmem:[#allocation8 + $0x2f8] sm:$0xff]
        %v1501 = vld [vmem:[#allocation8 + $0x300] sm:$0xff]
        %v1502 = vld [vmem:[#allocation8 + $0x308] sm:$0xff]
        %v1503 = vld [vmem:[#allocation8 + $0x310] sm:$0xff]
        %v1504 = vld [vmem:[#allocation8 + $0x318] sm:$0xff]
        %v1505 = vld [vmem:[#allocation8 + $0x320] sm:$0xff]
        %v1506 = vld [vmem:[#allocation8 + $0x328] sm:$0xff]
        %v1507 = vld [vmem:[#allocation8 + $0x330] sm:$0xff]
        %v1508 = vld [vmem:[#allocation8 + $0x338] sm:$0xff]
        %v1509 = vld [vmem:[#allocation8 + $0x340] sm:$0xff]
        %v1510 = vld [vmem:[#allocation8 + $0x348] sm:$0xff]
        %v1511 = vld [vmem:[#allocation8 + $0x350] sm:$0xff]
        %v1512 = vld [vmem:[#allocation8 + $0x358] sm:$0xff]
        %v1513 = vld [vmem:[#allocation8 + $0x360] sm:$0xff]
        %v1514 = vld [vmem:[#allocation8 + $0x368] sm:$0xff]
        %v1515 = vld [vmem:[#allocation8 + $0x370] sm:$0xff]
        %v1516 = vld [vmem:[#allocation8 + $0x378] sm:$0xff]
        %v1517 = vld [vmem:[#allocation8 + $0x380] sm:$0xff]
        %v1518 = vld [vmem:[#allocation8 + $0x388] sm:$0xff]
        %v1519 = vld [vmem:[#allocation8 + $0x390] sm:$0xff]
        %v1520 = vld [vmem:[#allocation8 + $0x398] sm:$0xff]
        %v1521 = vld [vmem:[#allocation8 + $0x3a0] sm:$0xff]
        %v1522 = vld [vmem:[#allocation8 + $0x3a8] sm:$0xff]
        %v1523 = vld [vmem:[#allocation8 + $0x3b0] sm:$0xff]
        %v1524 = vld [vmem:[#allocation8 + $0x3b8] sm:$0xff]
        %v1525 = vld [vmem:[#allocation8 + $0x3c0] sm:$0xff]
        %v1526 = vld [vmem:[#allocation8 + $0x3c8] sm:$0xff]
        %v1527 = vld [vmem:[#allocation8 + $0x3d0] sm:$0xff]
        %v1528 = vld [vmem:[#allocation8 + $0x3d8] sm:$0xff]
        %v1529 = vld [vmem:[#allocation8 + $0x3e0] sm:$0xff]
        %v1530 = vld [vmem:[#allocation8 + $0x3e8] sm:$0xff]
        %v1531 = vld [vmem:[#allocation8 + $0x3f0] sm:$0xff]
        %v1532 = vld [vmem:[#allocation8 + $0x3f8] sm:$0xff]
        %v1533 = vld [vmem:[%s4] sm:$0x3]
        %v1535 = vlaneseq
        %v1536 = vshrl.u32 %v1535, 7
        %v1537 = vsub.s32 0, %v1536
        %v1538 = vrot.slane %v1533, %v1537
        %v1539 = vlaneseq
        %v1540 = vshrl.u32 %v1539, 7
        %v1541 = vsub.s32 1, %v1540
        %v1542 = vrot.slane %v1533, %v1541
        %v1673 = vunpack.c.l.b16 %v1405
        %v1674 = vunpack.c.h.b16 %v1405
        %v1675 = vunpack.c.l.b16 %v1406
        %v1676 = vunpack.c.h.b16 %v1406
        %v1677 = vunpack.c.l.b16 %v1407
        %v1678 = vunpack.c.h.b16 %v1407
        %v1679 = vunpack.c.l.b16 %v1408
        %v1680 = vunpack.c.h.b16 %v1408
        %v1681 = vunpack.c.l.b16 %v1409
        %v1682 = vunpack.c.h.b16 %v1409
        %v1683 = vunpack.c.l.b16 %v1410
        %v1684 = vunpack.c.h.b16 %v1410
        %v1685 = vunpack.c.l.b16 %v1411
        %v1686 = vunpack.c.h.b16 %v1411
        %v1687 = vunpack.c.l.b16 %v1412
        %v1688 = vunpack.c.h.b16 %v1412
        %v1689 = vunpack.c.l.b16 %v1413
        %v1690 = vunpack.c.h.b16 %v1413
        %v1691 = vunpack.c.l.b16 %v1414
        %v1692 = vunpack.c.h.b16 %v1414
        %v1693 = vunpack.c.l.b16 %v1415
        %v1694 = vunpack.c.h.b16 %v1415
        %v1695 = vunpack.c.l.b16 %v1416
        %v1696 = vunpack.c.h.b16 %v1416
        %v1697 = vunpack.c.l.b16 %v1417
        %v1698 = vunpack.c.h.b16 %v1417
        %v1699 = vunpack.c.l.b16 %v1418
        %v1700 = vunpack.c.h.b16 %v1418
        %v1701 = vunpack.c.l.b16 %v1419
        %v1702 = vunpack.c.h.b16 %v1419
        %v1703 = vunpack.c.l.b16 %v1420
        %v1704 = vunpack.c.h.b16 %v1420
        %v1705 = vunpack.c.l.b16 %v1421
        %v1706 = vunpack.c.h.b16 %v1421
        %v1707 = vunpack.c.l.b16 %v1422
        %v1708 = vunpack.c.h.b16 %v1422
        %v1709 = vunpack.c.l.b16 %v1423
        %v1710 = vunpack.c.h.b16 %v1423
        %v1711 = vunpack.c.l.b16 %v1424
        %v1712 = vunpack.c.h.b16 %v1424
        %v1713 = vunpack.c.l.b16 %v1425
        %v1714 = vunpack.c.h.b16 %v1425
        %v1715 = vunpack.c.l.b16 %v1426
        %v1716 = vunpack.c.h.b16 %v1426
        %v1717 = vunpack.c.l.b16 %v1427
        %v1718 = vunpack.c.h.b16 %v1427
        %v1719 = vunpack.c.l.b16 %v1428
        %v1720 = vunpack.c.h.b16 %v1428
        %v1721 = vunpack.c.l.b16 %v1429
        %v1722 = vunpack.c.h.b16 %v1429
        %v1723 = vunpack.c.l.b16 %v1430
        %v1724 = vunpack.c.h.b16 %v1430
        %v1725 = vunpack.c.l.b16 %v1431
        %v1726 = vunpack.c.h.b16 %v1431
        %v1727 = vunpack.c.l.b16 %v1432
        %v1728 = vunpack.c.h.b16 %v1432
        %v1729 = vunpack.c.l.b16 %v1433
        %v1730 = vunpack.c.h.b16 %v1433
        %v1731 = vunpack.c.l.b16 %v1434
        %v1732 = vunpack.c.h.b16 %v1434
        %v1733 = vunpack.c.l.b16 %v1435
        %v1734 = vunpack.c.h.b16 %v1435
        %v1735 = vunpack.c.l.b16 %v1436
        %v1736 = vunpack.c.h.b16 %v1436
        %v1737 = vunpack.c.l.b16 %v1437
        %v1738 = vunpack.c.h.b16 %v1437
        %v1739 = vunpack.c.l.b16 %v1438
        %v1740 = vunpack.c.h.b16 %v1438
        %v1741 = vunpack.c.l.b16 %v1439
        %v1742 = vunpack.c.h.b16 %v1439
        %v1743 = vunpack.c.l.b16 %v1440
        %v1744 = vunpack.c.h.b16 %v1440
        %v1745 = vunpack.c.l.b16 %v1441
        %v1746 = vunpack.c.h.b16 %v1441
        %v1747 = vunpack.c.l.b16 %v1442
        %v1748 = vunpack.c.h.b16 %v1442
        %v1749 = vunpack.c.l.b16 %v1443
        %v1750 = vunpack.c.h.b16 %v1443
        %v1751 = vunpack.c.l.b16 %v1444
        %v1752 = vunpack.c.h.b16 %v1444
        %v1753 = vunpack.c.l.b16 %v1445
        %v1754 = vunpack.c.h.b16 %v1445
        %v1755 = vunpack.c.l.b16 %v1446
        %v1756 = vunpack.c.h.b16 %v1446
        %v1757 = vunpack.c.l.b16 %v1447
        %v1758 = vunpack.c.h.b16 %v1447
        %v1759 = vunpack.c.l.b16 %v1448
        %v1760 = vunpack.c.h.b16 %v1448
        %v1761 = vunpack.c.l.b16 %v1449
        %v1762 = vunpack.c.h.b16 %v1449
        %v1763 = vunpack.c.l.b16 %v1450
        %v1764 = vunpack.c.h.b16 %v1450
        %v1765 = vunpack.c.l.b16 %v1451
        %v1766 = vunpack.c.h.b16 %v1451
        %v1767 = vunpack.c.l.b16 %v1452
        %v1768 = vunpack.c.h.b16 %v1452
        %v1769 = vunpack.c.l.b16 %v1453
        %v1770 = vunpack.c.h.b16 %v1453
        %v1771 = vunpack.c.l.b16 %v1454
        %v1772 = vunpack.c.h.b16 %v1454
        %v1773 = vunpack.c.l.b16 %v1455
        %v1774 = vunpack.c.h.b16 %v1455
        %v1775 = vunpack.c.l.b16 %v1456
        %v1776 = vunpack.c.h.b16 %v1456
        %v1777 = vunpack.c.l.b16 %v1457
        %v1778 = vunpack.c.h.b16 %v1457
        %v1779 = vunpack.c.l.b16 %v1458
        %v1780 = vunpack.c.h.b16 %v1458
        %v1781 = vunpack.c.l.b16 %v1459
        %v1782 = vunpack.c.h.b16 %v1459
        %v1783 = vunpack.c.l.b16 %v1460
        %v1784 = vunpack.c.h.b16 %v1460
        %v1785 = vunpack.c.l.b16 %v1461
        %v1786 = vunpack.c.h.b16 %v1461
        %v1787 = vunpack.c.l.b16 %v1462
        %v1788 = vunpack.c.h.b16 %v1462
        %v1789 = vunpack.c.l.b16 %v1463
        %v1790 = vunpack.c.h.b16 %v1463
        %v1791 = vunpack.c.l.b16 %v1464
        %v1792 = vunpack.c.h.b16 %v1464
        %v1793 = vunpack.c.l.b16 %v1465
        %v1794 = vunpack.c.h.b16 %v1465
        %v1795 = vunpack.c.l.b16 %v1466
        %v1796 = vunpack.c.h.b16 %v1466
        %v1797 = vunpack.c.l.b16 %v1467
        %v1798 = vunpack.c.h.b16 %v1467
        %v1799 = vunpack.c.l.b16 %v1468
        %v1800 = vunpack.c.h.b16 %v1468
        %v1801 = vunpack.c.l.b16 %v1469
        %v1802 = vunpack.c.h.b16 %v1469
        %v1803 = vunpack.c.l.b16 %v1470
        %v1804 = vunpack.c.h.b16 %v1470
        %v1805 = vunpack.c.l.b16 %v1471
        %v1806 = vunpack.c.h.b16 %v1471
        %v1807 = vunpack.c.l.b16 %v1472
        %v1808 = vunpack.c.h.b16 %v1472
        %v1809 = vunpack.c.l.b16 %v1473
        %v1810 = vunpack.c.h.b16 %v1473
        %v1811 = vunpack.c.l.b16 %v1474
        %v1812 = vunpack.c.h.b16 %v1474
        %v1813 = vunpack.c.l.b16 %v1475
        %v1814 = vunpack.c.h.b16 %v1475
        %v1815 = vunpack.c.l.b16 %v1476
        %v1816 = vunpack.c.h.b16 %v1476
        %v1817 = vunpack.c.l.b16 %v1477
        %v1818 = vunpack.c.h.b16 %v1477
        %v1819 = vunpack.c.l.b16 %v1478
        %v1820 = vunpack.c.h.b16 %v1478
        %v1821 = vunpack.c.l.b16 %v1479
        %v1822 = vunpack.c.h.b16 %v1479
        %v1823 = vunpack.c.l.b16 %v1480
        %v1824 = vunpack.c.h.b16 %v1480
        %v1825 = vunpack.c.l.b16 %v1481
        %v1826 = vunpack.c.h.b16 %v1481
        %v1827 = vunpack.c.l.b16 %v1482
        %v1828 = vunpack.c.h.b16 %v1482
        %v1829 = vunpack.c.l.b16 %v1483
        %v1830 = vunpack.c.h.b16 %v1483
        %v1831 = vunpack.c.l.b16 %v1484
        %v1832 = vunpack.c.h.b16 %v1484
        %v1833 = vunpack.c.l.b16 %v1485
        %v1834 = vunpack.c.h.b16 %v1485
        %v1835 = vunpack.c.l.b16 %v1486
        %v1836 = vunpack.c.h.b16 %v1486
        %v1837 = vunpack.c.l.b16 %v1487
        %v1838 = vunpack.c.h.b16 %v1487
        %v1839 = vunpack.c.l.b16 %v1488
        %v1840 = vunpack.c.h.b16 %v1488
        %v1841 = vunpack.c.l.b16 %v1489
        %v1842 = vunpack.c.h.b16 %v1489
        %v1843 = vunpack.c.l.b16 %v1490
        %v1844 = vunpack.c.h.b16 %v1490
        %v1845 = vunpack.c.l.b16 %v1491
        %v1846 = vunpack.c.h.b16 %v1491
        %v1847 = vunpack.c.l.b16 %v1492
        %v1848 = vunpack.c.h.b16 %v1492
        %v1849 = vunpack.c.l.b16 %v1493
        %v1850 = vunpack.c.h.b16 %v1493
        %v1851 = vunpack.c.l.b16 %v1494
        %v1852 = vunpack.c.h.b16 %v1494
        %v1853 = vunpack.c.l.b16 %v1495
        %v1854 = vunpack.c.h.b16 %v1495
        %v1855 = vunpack.c.l.b16 %v1496
        %v1856 = vunpack.c.h.b16 %v1496
        %v1857 = vunpack.c.l.b16 %v1497
        %v1858 = vunpack.c.h.b16 %v1497
        %v1859 = vunpack.c.l.b16 %v1498
        %v1860 = vunpack.c.h.b16 %v1498
        %v1861 = vunpack.c.l.b16 %v1499
        %v1862 = vunpack.c.h.b16 %v1499
        %v1863 = vunpack.c.l.b16 %v1500
        %v1864 = vunpack.c.h.b16 %v1500
        %v1865 = vunpack.c.l.b16 %v1501
        %v1866 = vunpack.c.h.b16 %v1501
        %v1867 = vunpack.c.l.b16 %v1502
        %v1868 = vunpack.c.h.b16 %v1502
        %v1869 = vunpack.c.l.b16 %v1503
        %v1870 = vunpack.c.h.b16 %v1503
        %v1871 = vunpack.c.l.b16 %v1504
        %v1872 = vunpack.c.h.b16 %v1504
        %v1873 = vunpack.c.l.b16 %v1505
        %v1874 = vunpack.c.h.b16 %v1505
        %v1875 = vunpack.c.l.b16 %v1506
        %v1876 = vunpack.c.h.b16 %v1506
        %v1877 = vunpack.c.l.b16 %v1507
        %v1878 = vunpack.c.h.b16 %v1507
        %v1879 = vunpack.c.l.b16 %v1508
        %v1880 = vunpack.c.h.b16 %v1508
        %v1881 = vunpack.c.l.b16 %v1509
        %v1882 = vunpack.c.h.b16 %v1509
        %v1883 = vunpack.c.l.b16 %v1510
        %v1884 = vunpack.c.h.b16 %v1510
        %v1885 = vunpack.c.l.b16 %v1511
        %v1886 = vunpack.c.h.b16 %v1511
        %v1887 = vunpack.c.l.b16 %v1512
        %v1888 = vunpack.c.h.b16 %v1512
        %v1889 = vunpack.c.l.b16 %v1513
        %v1890 = vunpack.c.h.b16 %v1513
        %v1891 = vunpack.c.l.b16 %v1514
        %v1892 = vunpack.c.h.b16 %v1514
        %v1893 = vunpack.c.l.b16 %v1515
        %v1894 = vunpack.c.h.b16 %v1515
        %v1895 = vunpack.c.l.b16 %v1516
        %v1896 = vunpack.c.h.b16 %v1516
        %v1897 = vunpack.c.l.b16 %v1517
        %v1898 = vunpack.c.h.b16 %v1517
        %v1899 = vunpack.c.l.b16 %v1518
        %v1900 = vunpack.c.h.b16 %v1518
        %v1901 = vunpack.c.l.b16 %v1519
        %v1902 = vunpack.c.h.b16 %v1519
        %v1903 = vunpack.c.l.b16 %v1520
        %v1904 = vunpack.c.h.b16 %v1520
        %v1905 = vunpack.c.l.b16 %v1521
        %v1906 = vunpack.c.h.b16 %v1521
        %v1907 = vunpack.c.l.b16 %v1522
        %v1908 = vunpack.c.h.b16 %v1522
        %v1909 = vunpack.c.l.b16 %v1523
        %v1910 = vunpack.c.h.b16 %v1523
        %v1911 = vunpack.c.l.b16 %v1524
        %v1912 = vunpack.c.h.b16 %v1524
        %v1913 = vunpack.c.l.b16 %v1525
        %v1914 = vunpack.c.h.b16 %v1525
        %v1915 = vunpack.c.l.b16 %v1526
        %v1916 = vunpack.c.h.b16 %v1526
        %v1917 = vunpack.c.l.b16 %v1527
        %v1918 = vunpack.c.h.b16 %v1527
        %v1919 = vunpack.c.l.b16 %v1528
        %v1920 = vunpack.c.h.b16 %v1528
        %v1921 = vunpack.c.l.b16 %v1529
        %v1922 = vunpack.c.h.b16 %v1529
        %v1923 = vunpack.c.l.b16 %v1530
        %v1924 = vunpack.c.h.b16 %v1530
        %v1925 = vunpack.c.l.b16 %v1531
        %v1926 = vunpack.c.h.b16 %v1531
        %v1927 = vunpack.c.l.b16 %v1532
        %v1928 = vunpack.c.h.b16 %v1532
        %v1929 = vpack.c.b16 %v1675, %v1673
        %v1930 = vpack.c.b16 %v1676, %v1674
        %v1931 = vpack.c.b16 %v1679, %v1677
        %v1932 = vpack.c.b16 %v1680, %v1678
        %v1933 = vpack.c.b16 %v1683, %v1681
        %v1934 = vpack.c.b16 %v1684, %v1682
        %v1935 = vpack.c.b16 %v1687, %v1685
        %v1936 = vpack.c.b16 %v1688, %v1686
        %v1937 = vpack.c.b16 %v1691, %v1689
        %v1938 = vpack.c.b16 %v1692, %v1690
        %v1939 = vpack.c.b16 %v1695, %v1693
        %v1940 = vpack.c.b16 %v1696, %v1694
        %v1941 = vpack.c.b16 %v1699, %v1697
        %v1942 = vpack.c.b16 %v1700, %v1698
        %v1943 = vpack.c.b16 %v1703, %v1701
        %v1944 = vpack.c.b16 %v1704, %v1702
        %v1945 = vpack.c.b16 %v1707, %v1705
        %v1946 = vpack.c.b16 %v1708, %v1706
        %v1947 = vpack.c.b16 %v1711, %v1709
        %v1948 = vpack.c.b16 %v1712, %v1710
        %v1949 = vpack.c.b16 %v1715, %v1713
        %v1950 = vpack.c.b16 %v1716, %v1714
        %v1951 = vpack.c.b16 %v1719, %v1717
        %v1952 = vpack.c.b16 %v1720, %v1718
        %v1953 = vpack.c.b16 %v1723, %v1721
        %v1954 = vpack.c.b16 %v1724, %v1722
        %v1955 = vpack.c.b16 %v1727, %v1725
        %v1956 = vpack.c.b16 %v1728, %v1726
        %v1957 = vpack.c.b16 %v1731, %v1729
        %v1958 = vpack.c.b16 %v1732, %v1730
        %v1959 = vpack.c.b16 %v1735, %v1733
        %v1960 = vpack.c.b16 %v1736, %v1734
        %v1961 = vpack.c.b16 %v1739, %v1737
        %v1962 = vpack.c.b16 %v1740, %v1738
        %v1963 = vpack.c.b16 %v1743, %v1741
        %v1964 = vpack.c.b16 %v1744, %v1742
        %v1965 = vpack.c.b16 %v1747, %v1745
        %v1966 = vpack.c.b16 %v1748, %v1746
        %v1967 = vpack.c.b16 %v1751, %v1749
        %v1968 = vpack.c.b16 %v1752, %v1750
        %v1969 = vpack.c.b16 %v1755, %v1753
        %v1970 = vpack.c.b16 %v1756, %v1754
        %v1971 = vpack.c.b16 %v1759, %v1757
        %v1972 = vpack.c.b16 %v1760, %v1758
        %v1973 = vpack.c.b16 %v1763, %v1761
        %v1974 = vpack.c.b16 %v1764, %v1762
        %v1975 = vpack.c.b16 %v1767, %v1765
        %v1976 = vpack.c.b16 %v1768, %v1766
        %v1977 = vpack.c.b16 %v1771, %v1769
        %v1978 = vpack.c.b16 %v1772, %v1770
        %v1979 = vpack.c.b16 %v1775, %v1773
        %v1980 = vpack.c.b16 %v1776, %v1774
        %v1981 = vpack.c.b16 %v1779, %v1777
        %v1982 = vpack.c.b16 %v1780, %v1778
        %v1983 = vpack.c.b16 %v1783, %v1781
        %v1984 = vpack.c.b16 %v1784, %v1782
        %v1985 = vpack.c.b16 %v1787, %v1785
        %v1986 = vpack.c.b16 %v1788, %v1786
        %v1987 = vpack.c.b16 %v1791, %v1789
        %v1988 = vpack.c.b16 %v1792, %v1790
        %v1989 = vpack.c.b16 %v1795, %v1793
        %v1990 = vpack.c.b16 %v1796, %v1794
        %v1991 = vpack.c.b16 %v1799, %v1797
        %v1992 = vpack.c.b16 %v1800, %v1798
        %v1993 = vpack.c.b16 %v1803, %v1801
        %v1994 = vpack.c.b16 %v1804, %v1802
        %v1995 = vpack.c.b16 %v1807, %v1805
        %v1996 = vpack.c.b16 %v1808, %v1806
        %v1997 = vpack.c.b16 %v1811, %v1809
        %v1998 = vpack.c.b16 %v1812, %v1810
        %v1999 = vpack.c.b16 %v1815, %v1813
        %v2000 = vpack.c.b16 %v1816, %v1814
        %v2001 = vpack.c.b16 %v1819, %v1817
        %v2002 = vpack.c.b16 %v1820, %v1818
        %v2003 = vpack.c.b16 %v1823, %v1821
        %v2004 = vpack.c.b16 %v1824, %v1822
        %v2005 = vpack.c.b16 %v1827, %v1825
        %v2006 = vpack.c.b16 %v1828, %v1826
        %v2007 = vpack.c.b16 %v1831, %v1829
        %v2008 = vpack.c.b16 %v1832, %v1830
        %v2009 = vpack.c.b16 %v1835, %v1833
        %v2010 = vpack.c.b16 %v1836, %v1834
        %v2011 = vpack.c.b16 %v1839, %v1837
        %v2012 = vpack.c.b16 %v1840, %v1838
        %v2013 = vpack.c.b16 %v1843, %v1841
        %v2014 = vpack.c.b16 %v1844, %v1842
        %v2015 = vpack.c.b16 %v1847, %v1845
        %v2016 = vpack.c.b16 %v1848, %v1846
        %v2017 = vpack.c.b16 %v1851, %v1849
        %v2018 = vpack.c.b16 %v1852, %v1850
        %v2019 = vpack.c.b16 %v1855, %v1853
        %v2020 = vpack.c.b16 %v1856, %v1854
        %v2021 = vpack.c.b16 %v1859, %v1857
        %v2022 = vpack.c.b16 %v1860, %v1858
        %v2023 = vpack.c.b16 %v1863, %v1861
        %v2024 = vpack.c.b16 %v1864, %v1862
        %v2025 = vpack.c.b16 %v1867, %v1865
        %v2026 = vpack.c.b16 %v1868, %v1866
        %v2027 = vpack.c.b16 %v1871, %v1869
        %v2028 = vpack.c.b16 %v1872, %v1870
        %v2029 = vpack.c.b16 %v1875, %v1873
        %v2030 = vpack.c.b16 %v1876, %v1874
        %v2031 = vpack.c.b16 %v1879, %v1877
        %v2032 = vpack.c.b16 %v1880, %v1878
        %v2033 = vpack.c.b16 %v1883, %v1881
        %v2034 = vpack.c.b16 %v1884, %v1882
        %v2035 = vpack.c.b16 %v1887, %v1885
        %v2036 = vpack.c.b16 %v1888, %v1886
        %v2037 = vpack.c.b16 %v1891, %v1889
        %v2038 = vpack.c.b16 %v1892, %v1890
        %v2039 = vpack.c.b16 %v1895, %v1893
        %v2040 = vpack.c.b16 %v1896, %v1894
        %v2041 = vpack.c.b16 %v1899, %v1897
        %v2042 = vpack.c.b16 %v1900, %v1898
        %v2043 = vpack.c.b16 %v1903, %v1901
        %v2044 = vpack.c.b16 %v1904, %v1902
        %v2045 = vpack.c.b16 %v1907, %v1905
        %v2046 = vpack.c.b16 %v1908, %v1906
        %v2047 = vpack.c.b16 %v1911, %v1909
        %v2048 = vpack.c.b16 %v1912, %v1910
        %v2049 = vpack.c.b16 %v1915, %v1913
        %v2050 = vpack.c.b16 %v1916, %v1914
        %v2051 = vpack.c.b16 %v1919, %v1917
        %v2052 = vpack.c.b16 %v1920, %v1918
        %v2053 = vpack.c.b16 %v1923, %v1921
        %v2054 = vpack.c.b16 %v1924, %v1922
        %v2055 = vpack.c.b16 %v1927, %v1925
        %v2056 = vpack.c.b16 %v1928, %v1926
        %2185 = vmatprep.subr.bf16.mxu0 %v1930
        %2186 = vmatpush1.bf16.msra.mxu0 %v1929
        %2187 = vmatprep.subr.bf16.mxu0 %v1932
        %2188 = vmatpush1.bf16.msra.mxu0 %v1931
        %2189 = vmatprep.subr.bf16.mxu0 %v1934
        %2190 = vmatpush1.bf16.msra.mxu0 %v1933
        %2191 = vmatprep.subr.bf16.mxu0 %v1936
        %2192 = vmatpush1.bf16.msra.mxu0 %v1935
        %2193 = vmatprep.subr.bf16.mxu0 %v1938
        %2194 = vmatpush1.bf16.msra.mxu0 %v1937
        %2195 = vmatprep.subr.bf16.mxu0 %v1940
        %2196 = vmatpush1.bf16.msra.mxu0 %v1939
        %2197 = vmatprep.subr.bf16.mxu0 %v1942
        %2198 = vmatpush1.bf16.msra.mxu0 %v1941
        %2199 = vmatprep.subr.bf16.mxu0 %v1944
        %2200 = vmatpush1.bf16.msra.mxu0 %v1943
        %2201 = vmatprep.subr.bf16.mxu0 %v1946
        %2202 = vmatpush1.bf16.msra.mxu0 %v1945
        %2203 = vmatprep.subr.bf16.mxu0 %v1948
        %2204 = vmatpush1.bf16.msra.mxu0 %v1947
        %2205 = vmatprep.subr.bf16.mxu0 %v1950
        %2206 = vmatpush1.bf16.msra.mxu0 %v1949
        %2207 = vmatprep.subr.bf16.mxu0 %v1952
        %2208 = vmatpush1.bf16.msra.mxu0 %v1951
        %2209 = vmatprep.subr.bf16.mxu0 %v1954
        %2210 = vmatpush1.bf16.msra.mxu0 %v1953
        %2211 = vmatprep.subr.bf16.mxu0 %v1956
        %2212 = vmatpush1.bf16.msra.mxu0 %v1955
        %2213 = vmatprep.subr.bf16.mxu0 %v1958
        %2214 = vmatpush1.bf16.msra.mxu0 %v1957
        %2215 = vmatprep.subr.bf16.mxu0 %v1960
        %2216 = vmatpush1.bf16.msra.mxu0 %v1959
        %2217 = vmatprep.mubr.bf16.mxu0 %v1398
        %2218 = vmatmul.mubr.bf16.gmra.mrb[0].mxu0 %v1397
        %v2219 = vpop.f32.mrb[0].mxu0
        %v2220 = vadd.f32 %v1538, %v2219
        %v2221 = vpop.f32.mrb[0].mxu0
        %v2222 = vadd.f32 %v1542, %v2221
        %v2223 = vpop.f32.mrb[0].mxu0
        %v2224 = vpop.f32.mrb[0].mxu0
        %2225 = vdwg.mxu0
        %2226 = vmatprep.subr.bf16.mxu0 %v1962
        %2227 = vmatpush1.bf16.msra.mxu0 %v1961
        %2228 = vmatprep.subr.bf16.mxu0 %v1964
        %2229 = vmatpush1.bf16.msra.mxu0 %v1963
        %2230 = vmatprep.subr.bf16.mxu0 %v1966
        %2231 = vmatpush1.bf16.msra.mxu0 %v1965
        %2232 = vmatprep.subr.bf16.mxu0 %v1968
        %2233 = vmatpush1.bf16.msra.mxu0 %v1967
        %2234 = vmatprep.subr.bf16.mxu0 %v1970
        %2235 = vmatpush1.bf16.msra.mxu0 %v1969
        %2236 = vmatprep.subr.bf16.mxu0 %v1972
        %2237 = vmatpush1.bf16.msra.mxu0 %v1971
        %2238 = vmatprep.subr.bf16.mxu0 %v1974
        %2239 = vmatpush1.bf16.msra.mxu0 %v1973
        %2240 = vmatprep.subr.bf16.mxu0 %v1976
        %2241 = vmatpush1.bf16.msra.mxu0 %v1975
        %2242 = vmatprep.subr.bf16.mxu0 %v1978
        %2243 = vmatpush1.bf16.msra.mxu0 %v1977
        %2244 = vmatprep.subr.bf16.mxu0 %v1980
        %2245 = vmatpush1.bf16.msra.mxu0 %v1979
        %2246 = vmatprep.subr.bf16.mxu0 %v1982
        %2247 = vmatpush1.bf16.msra.mxu0 %v1981
        %2248 = vmatprep.subr.bf16.mxu0 %v1984
        %2249 = vmatpush1.bf16.msra.mxu0 %v1983
        %2250 = vmatprep.subr.bf16.mxu0 %v1986
        %2251 = vmatpush1.bf16.msra.mxu0 %v1985
        %2252 = vmatprep.subr.bf16.mxu0 %v1988
        %2253 = vmatpush1.bf16.msra.mxu0 %v1987
        %2254 = vmatprep.subr.bf16.mxu0 %v1990
        %2255 = vmatpush1.bf16.msra.mxu0 %v1989
        %2256 = vmatprep.subr.bf16.mxu0 %v1992
        %2257 = vmatpush1.bf16.msra.mxu0 %v1991
        %2258 = vmatprep.mubr.bf16.mxu0 %v1400
        %2259 = vmatmul.mubr.bf16.gmra.mrb[0].mxu0 %v1399
        %v2260 = vpop.f32.mrb[0].mxu0
        %v2261 = vadd.f32 %v2220, %v2260
        %v2262 = vpop.f32.mrb[0].mxu0
        %v2263 = vadd.f32 %v2222, %v2262
        %v2264 = vpop.f32.mrb[0].mxu0
        %v2265 = vpop.f32.mrb[0].mxu0
        %2266 = vdwg.mxu0
        %2267 = vmatprep.subr.bf16.mxu0 %v1994
        %2268 = vmatpush1.bf16.msra.mxu0 %v1993
        %2269 = vmatprep.subr.bf16.mxu0 %v1996
        %2270 = vmatpush1.bf16.msra.mxu0 %v1995
        %2271 = vmatprep.subr.bf16.mxu0 %v1998
        %2272 = vmatpush1.bf16.msra.mxu0 %v1997
        %2273 = vmatprep.subr.bf16.mxu0 %v2000
        %2274 = vmatpush1.bf16.msra.mxu0 %v1999
        %2275 = vmatprep.subr.bf16.mxu0 %v2002
        %2276 = vmatpush1.bf16.msra.mxu0 %v2001
        %2277 = vmatprep.subr.bf16.mxu0 %v2004
        %2278 = vmatpush1.bf16.msra.mxu0 %v2003
        %2279 = vmatprep.subr.bf16.mxu0 %v2006
        %2280 = vmatpush1.bf16.msra.mxu0 %v2005
        %2281 = vmatprep.subr.bf16.mxu0 %v2008
        %2282 = vmatpush1.bf16.msra.mxu0 %v2007
        %2283 = vmatprep.subr.bf16.mxu0 %v2010
        %2284 = vmatpush1.bf16.msra.mxu0 %v2009
        %2285 = vmatprep.subr.bf16.mxu0 %v2012
        %2286 = vmatpush1.bf16.msra.mxu0 %v2011
        %2287 = vmatprep.subr.bf16.mxu0 %v2014
        %2288 = vmatpush1.bf16.msra.mxu0 %v2013
        %2289 = vmatprep.subr.bf16.mxu0 %v2016
        %2290 = vmatpush1.bf16.msra.mxu0 %v2015
        %2291 = vmatprep.subr.bf16.mxu0 %v2018
        %2292 = vmatpush1.bf16.msra.mxu0 %v2017
        %2293 = vmatprep.subr.bf16.mxu0 %v2020
        %2294 = vmatpush1.bf16.msra.mxu0 %v2019
        %2295 = vmatprep.subr.bf16.mxu0 %v2022
        %2296 = vmatpush1.bf16.msra.mxu0 %v2021
        %2297 = vmatprep.subr.bf16.mxu0 %v2024
        %2298 = vmatpush1.bf16.msra.mxu0 %v2023
        %2299 = vmatprep.mubr.bf16.mxu0 %v1402
        %2300 = vmatmul.mubr.bf16.gmra.mrb[0].mxu0 %v1401
        %v2301 = vpop.f32.mrb[0].mxu0
        %v2302 = vadd.f32 %v2261, %v2301
        %v2303 = vpop.f32.mrb[0].mxu0
        %v2304 = vadd.f32 %v2263, %v2303
        %v2305 = vpop.f32.mrb[0].mxu0
        %v2306 = vpop.f32.mrb[0].mxu0
        %2307 = vdwg.mxu0
        %2308 = vmatprep.subr.bf16.mxu0 %v2026
        %2309 = vmatpush1.bf16.msra.mxu0 %v2025
        %2310 = vmatprep.subr.bf16.mxu0 %v2028
        %2311 = vmatpush1.bf16.msra.mxu0 %v2027
        %2312 = vmatprep.subr.bf16.mxu0 %v2030
        %2313 = vmatpush1.bf16.msra.mxu0 %v2029
        %2314 = vmatprep.subr.bf16.mxu0 %v2032
        %2315 = vmatpush1.bf16.msra.mxu0 %v2031
        %2316 = vmatprep.subr.bf16.mxu0 %v2034
        %2317 = vmatpush1.bf16.msra.mxu0 %v2033
        %2318 = vmatprep.subr.bf16.mxu0 %v2036
        %2319 = vmatpush1.bf16.msra.mxu0 %v2035
        %2320 = vmatprep.subr.bf16.mxu0 %v2038
        %2321 = vmatpush1.bf16.msra.mxu0 %v2037
        %2322 = vmatprep.subr.bf16.mxu0 %v2040
        %2323 = vmatpush1.bf16.msra.mxu0 %v2039
        %2324 = vmatprep.subr.bf16.mxu0 %v2042
        %2325 = vmatpush1.bf16.msra.mxu0 %v2041
        %2326 = vmatprep.subr.bf16.mxu0 %v2044
        %2327 = vmatpush1.bf16.msra.mxu0 %v2043
        %2328 = vmatprep.subr.bf16.mxu0 %v2046
        %2329 = vmatpush1.bf16.msra.mxu0 %v2045
        %2330 = vmatprep.subr.bf16.mxu0 %v2048
        %2331 = vmatpush1.bf16.msra.mxu0 %v2047
        %2332 = vmatprep.subr.bf16.mxu0 %v2050
        %2333 = vmatpush1.bf16.msra.mxu0 %v2049
        %2334 = vmatprep.subr.bf16.mxu0 %v2052
        %2335 = vmatpush1.bf16.msra.mxu0 %v2051
        %2336 = vmatprep.subr.bf16.mxu0 %v2054
        %2337 = vmatpush1.bf16.msra.mxu0 %v2053
        %2338 = vmatprep.subr.bf16.mxu0 %v2056
        %2339 = vmatpush1.bf16.msra.mxu0 %v2055
        %2340 = vmatprep.mubr.bf16.mxu0 %v1404
        %2341 = vmatmul.mubr.bf16.gmra.mrb[0].mxu0 %v1403
        %v2342 = vpop.f32.mrb[0].mxu0
        %v2343 = vadd.f32 %v2302, %v2342
        %v2344 = vpop.f32.mrb[0].mxu0
        %v2345 = vadd.f32 %v2304, %v2344
        %v2346 = vpop.f32.mrb[0].mxu0
        %v2347 = vpop.f32.mrb[0].mxu0
        %2348 = vdwg.mxu0
        %v2349 = vadd.f32 %v2343, %v338
        %v2350 = vadd.f32 %v2345, %v339
        %v2351 = vadd.f32 %v2349, %v2350
        %2352 = vadd.xlane.f32.xlu0 %v2351
        %v2353 = vpop.xlane.xlu0 %2352
        %v2354 = vrcp.pop 256.0
        %v2355 = vmul.f32 %v2353, %v2354
        %v2356 = vsub.f32 %v2349, %v2355
        %v2357 = vsub.f32 %v2350, %v2355
        %v2358 = vmul.f32 %v2356, %v2356
        %v2359 = vmul.f32 %v2357, %v2357
        %v2360 = vadd.f32 %v2358, %v2359
        %2361 = vadd.xlane.f32.xlu0 %v2360
        %v2362 = vpop.xlane.xlu0 %2361
        %v2363 = vmul.f32 %v2362, %v2354
        %v2364 = vadd.f32 %v2363, 1e-05
        %v2365 = vrsqrt.pop %v2364
        %v2366 = vmul.f32 %v2356, %v2365
        %v2367 = vmul.f32 %v2357, %v2365
        %v2368 = vld [vmem:[%s5] sm:$0x3]
        %v2370 = vlaneseq
        %v2371 = vshrl.u32 %v2370, 7
        %v2372 = vsub.s32 0, %v2371
        %v2373 = vrot.slane %v2368, %v2372
        %v2374 = vlaneseq
        %v2375 = vshrl.u32 %v2374, 7
        %v2376 = vsub.s32 1, %v2375
        %v2377 = vrot.slane %v2368, %v2376
        %v2380 = vmul.f32 %v2366, %v2373
        %v2381 = vmul.f32 %v2367, %v2377
        %v2382 = vld [vmem:[%s6] sm:$0x3]
        %v2384 = vlaneseq
        %v2385 = vshrl.u32 %v2384, 7
        %v2386 = vsub.s32 0, %v2385
        %v2387 = vrot.slane %v2382, %v2386
        %v2388 = vlaneseq
        %v2389 = vshrl.u32 %v2388, 7
        %v2390 = vsub.s32 1, %v2389
        %v2391 = vrot.slane %v2382, %v2390
        %v2394 = vadd.f32 %v2380, %v2387
        %v2395 = vadd.f32 %v2381, %v2391
        %2396 = vst [vmem:[%s336] sm:$0xff] %v2394
        %2397 = vst [vmem:[%s336 + $0x8] sm:$0xff] %v2395
        %s2398 = sand.u32 %s186, 1
        %s2399 = scalar_lea.sflag [#allocation4], %s2398
        %s2400 = sand.u32 %s186, 1
        %s2401 = smul.addr %s2400, 16
        %s2402 = scalar_lea.vmem [#allocation10], %s2401
        // Predicated region
        $region65: #{tpu_custom_call.1} parent=47 // pred_check
          %p2403 = pneg %p196
        $region66: #{tpu_custom_call.1} parent=47 // pred_check_branch
          %2405 = sbr.rel (%p2403) target = $region68
        $region67: #{tpu_custom_call.1} parent=47 // pred_region
          %s2407 = ssub.s32 256, 256
          %2408 = vsyncadd %s2399, %s2407
          %s2409 = smul.addr %s26, 2
          %s2410 = smul.addr %s2409, 128
          %s2411 = scalar_lea.hbm %s7, %s2410
          %s2413 = sshll.u32 %s2402, 4
          %s2414 = int_to_ptr.vmem [resolvable:$true] %s2413
          %2416 = dma.vmem_to_hbm [thread:$0]  %s2414, 256, %s2411, %s2399
        $region68: #{tpu_custom_call.1} parent=47 // pred_fallthru
          _
      $region48: #{tpu_custom_call.1} parent=5 // pred_fallthru
        _
      %p2417 = scmp.le.s32.totalorder 2, %s21
      // Predicated region
      $region69: #{tpu_custom_call.1} parent=5 // pred_check
        %p2418 = pneg %p2417
      $region70: #{tpu_custom_call.1} parent=5 // pred_check_branch
        %2420 = sbr.rel (%p2418) target = $region72
      $region71: #{tpu_custom_call.1} parent=5 // pred_region
        %s2421 = ssub.s32 %s21, 2
        // Predicated region
        $region73: #{tpu_custom_call.1} parent=71 // pred_check
          %p2422 = pneg %p202
        $region74: #{tpu_custom_call.1} parent=71 // pred_check_branch
          %2424 = sbr.rel (%p2422) target = $region76
        $region75: #{tpu_custom_call.1} parent=71 // pred_region
          %s2425 = sand.u32 %s187, 1
          %s2426 = scalar_lea.sflag [#allocation4], %s2425
          %s2427 = sand.u32 %s187, 1
          %s2428 = smul.addr %s2427, 16
          %s2429 = scalar_lea.vmem [#allocation10], %s2428
          %2430 = dma.done %s2426, 256
        $region76: #{tpu_custom_call.1} parent=71 // pred_fallthru
          _
      $region72: #{tpu_custom_call.1} parent=5 // pred_fallthru
        _
    $region6: #{tpu_custom_call.1} parent=1 // loop_footer
      %s25 = sadd.s32 1, %s21
    $region7: #{tpu_custom_call.1} parent=1 // loop_footer_branch
      %20 = sbr.rel target = $region3
    $region8: #{tpu_custom_call.1} parent=1 // loop_exit
      _
    %2431 = vsyncpa [#allocation3], 1
    %s2432 = scalar_lea.sflag [#allocation3], 1
    %2433 = vsyncpa %s2432, 1
    %2434 = vsyncpa [#allocation6], 1
    %2435 = vsyncpa [#allocation9], 1
    %2436 = vsyncpa [#allocation4], 1
    %s2437 = scalar_lea.sflag [#allocation4], 1
    %2438 = vsyncpa %s2437, 1

</llo_original>
